<compile_context>
chip_gen: v6e
topology: v6e:2x2x1
jax: 0.10.0
libtpu: 0.0.40
codegen_flags: <defaults>
</compile_context>

<pallas_src>
import functools

import jax
import jax.numpy as jnp
from jax import lax
from jax.experimental import pallas as pl
from jax.experimental.pallas import tpu as pltpu


# ----------------------------------------------------------------------------
# Kernel
# ----------------------------------------------------------------------------
def _irb_kernel(x_ref, w1_ref, dw_ref, bdw_ref, w2_ref, b2_ref, mask_ref,
                o_ref, *, W, ew_dtype):
    """One grid step: Bt images.  Channels on sublanes, pixels on lanes."""
    M = x_ref.shape[-1]                                   # Bt * H * W lanes

    # ---- fc1 (1x1 conv) + bias, both on the MXU ---------------------------
    # w1_ref is (Chid, C_aug) with b1 folded in as an extra column that
    # multiplies the ones-row appended to x; bf16 inputs, f32 accumulation.
    h = jnp.dot(w1_ref[...], x_ref[...], preferred_element_type=jnp.float32)
    # Hardswish with its 1/6 folded into the (linear) depthwise weights:
    # this computes 6 * hardswish(h).
    h = (h * jnp.clip(h + 3.0, 0.0, 6.0)).astype(ew_dtype)

    # ---- depthwise 3x3, padding=1, stride=1, groups=Chid -------------------
    # Lane m = b_local*H*W + y*W + x.  Tap (dy,dx) needs h[:, m + dy*W + dx],
    # i.e. a circular lane roll (XLU) plus a precomputed boundary mask.
    dwc = dw_ref[...].astype(ew_dtype)                    # (Chid, 9), read once
    mk = mask_ref[...].astype(ew_dtype)                   # (8, M) of {0, 1}
    acc = h * dwc[:, 4:5]                                 # center tap
    km = 0
    for dy in (-1, 0, 1):
        for dx in (-1, 0, 1):
            if dy == 0 and dx == 0:
                continue
            delta = dy * W + dx
            shifted = pltpu.roll(h, shift=(-delta) % M, axis=1)
            k = (dy + 1) * 3 + (dx + 1)
            acc = acc + (shifted * mk[km:km + 1, :]) * dwc[:, k:k + 1]
            km += 1

    acc = acc.astype(jnp.float32) + bdw_ref[...]          # (Chid, M) f32
    # Second hardswish; its 1/6 is folded into w2.
    acc = acc * jnp.clip(acc + 3.0, 0.0, 6.0)

    # ---- fc2 (1x1 conv) -----------------------------------------------------
    out = jnp.dot(w2_ref[...], acc.astype(w2_ref.dtype),
                  preferred_element_type=jnp.float32)     # (Cout, M)
    o_ref[...] = (out + b2_ref[...]).astype(o_ref.dtype)  # lane-dense store


# ----------------------------------------------------------------------------
# Generation- and channel-aware tiling helpers
# ----------------------------------------------------------------------------
def _tpu_chip_info():
    """Best-effort (generation, tensorcores_per_chip, physical_vmem_bytes)."""
    kind = ""
    try:
        kind = jax.devices()[0].device_kind.lower()
    except Exception:
        pass
    if "v7" in kind:
        gen, cores, vmem = "v7x", 2, 64 * 2**20
    elif "v6" in kind:
        gen, cores, vmem = "v6e", 1, 128 * 2**20
    elif "v5 lite" in kind or "v5e" in kind or "v5lite" in kind:
        gen, cores, vmem = "v5e", 1, 128 * 2**20
    else:
        # Unknown (v3/v4/v5p/...): be conservative on VMEM; assume 2 cores so
        # the ">=2 grid steps" rule stays on (harmless if wrong).
        gen, cores, vmem = "unknown", 2, 64 * 2**20
    try:  # Prefer the exact hardware query when available.
        cap = int(getattr(pltpu.get_tpu_info(), "vmem_capacity_bytes"))
        if cap > 0:
            vmem = cap
    except Exception:
        pass
    return gen, cores, vmem


def _resident_weight_bytes(c_aug, chid, cout, mat_bytes):
    """Padded VMEM footprint of the resident weight blocks (counted twice:
    double-buffering / one copy per TensorCore on v7x)."""
    def padded(rows, cols, elem):
        sub = 32 // elem                       # sublane packing: bf16->16, f32->8
        return (-(-rows // sub) * sub) * (-(-cols // 128) * 128) * elem
    tot = (padded(chid, c_aug, mat_bytes)      # w1^T (+ b1 column)
           + padded(chid, 9, 4)                # depthwise weights
           + padded(chid, 1, 4)                # depthwise bias
           + padded(cout, chid, mat_bytes)     # w2^T
           + padded(cout, 1, 4))               # fc2 bias
    return 2 * tot


def _pick_batch_tile(B, N, c_aug, chid, cout, *, vmem_budget, multi_core,
                     mat_bytes, out_bytes, ew_bytes):
    """Largest images-per-step whose VMEM working set fits the budget.

    Per-step model (M = bt*N lanes):
      * double-buffered input block     2 * c_aug * M * mat_bytes
      * double-buffered output block    2 * cout  * M * out_bytes
      * boundary-mask block             2 * 8     * M * 4
      * ~4 live (Chid, M) elementwise temporaries (h / shifted / acc / slack)
      * one (Cout, M) f32 fc2 accumulator before the store
    On multi-TensorCore chips (v7x) keep >= 2 grid steps so both cores get
    work; on single-TC chips (v5e/v6e) the single largest block wins.
    """
    def step_bytes(bt):
        m = bt * N
        return m * (2 * c_aug * mat_bytes
                    + 2 * cout * out_bytes
                    + 2 * 8 * 4
                    + 4 * chid * ew_bytes
                    + cout * 4)

    best = 1
    for bt in range(1, B + 1):
        if B % bt:
            continue
        if multi_core and B >= 2 and B // bt < 2:
            continue
        if step_bytes(bt) > vmem_budget:
            continue
        best = bt
    return best


def _boundary_masks(H, W, bt, dtype=jnp.float32):
    """(8, bt*H*W) {0,1} destination-lane masks for the 8 non-center taps, in
    the kernel's tap order ((-1,-1),(-1,0),(-1,1),(0,-1),(0,1),(1,-1),(1,0),(1,1))."""
    N = H * W
    yy, xx = jnp.meshgrid(jnp.arange(H), jnp.arange(W), indexing="ij")
    yy = yy.reshape(1, N)
    xx = xx.reshape(1, N)
    rows = []
    for dy in (-1, 0, 1):
        for dx in (-1, 0, 1):
            if dy == 0 and dx == 0:
                continue
            m = jnp.ones((1, N), jnp.bool_)
            if dy == -1:
                m = m & (yy >= 1)
            if dy == 1:
                m = m & (yy < H - 1)
            if dx == -1:
                m = m & (xx >= 1)
            if dx == 1:
                m = m & (xx < W - 1)
            rows.append(m)
    masks = jnp.concatenate(rows, axis=0).astype(dtype)        # (8, N)
    return jnp.tile(masks, (1, bt))                            # (8, bt*N)


# ----------------------------------------------------------------------------
# Wrapper
# ----------------------------------------------------------------------------
def irb_forward(x, H, W, params, *, matmul_dtype=jnp.bfloat16,
                elementwise_dtype=jnp.float32, batch_tile=None,
                out_dtype=None):
    """IRB forward.  x: (B, N, C) with N == H*W.  Returns (B, N, Cout).

    elementwise_dtype=jnp.bfloat16 roughly halves VPU/XLU work on v6e/v7x
    (the VALU is the binding slot for realistic channel counts); keep float32
    on v5e (no bf16 VALU) or whenever full elementwise precision is required.
    """
    B, N, C = x.shape
    assert N == H * W
    # Lane-dense layout: each image occupies a multiple of 128 lanes.
    assert N % 128 == 0, "kernel assumes H*W % 128 == 0 (lane-dense layout)"
    # TODO(synk): real P2T resolutions (3136/784/196/49) need an H-strip grid
    # axis with true halo rows; circular roll + masks is not sufficient there.

    w1, b1, dw, bdw, w2, b2 = params
    chid = w1.shape[1]
    cout = w2.shape[1]
    out_dtype = out_dtype or x.dtype

    # fc1 contraction padded to a multiple of 8: [x ; ones ; zeros].
    c_aug = -(-(C + 1) // 8) * 8

    _gen, cores, vmem_phys = _tpu_chip_info()
    vmem_limit = min(max(int(0.75 * vmem_phys), 32 * 2**20), 100 * 2**20)

    mat_bytes = jnp.dtype(matmul_dtype).itemsize
    if batch_tile is None:
        budget = (int(0.8 * vmem_limit)
                  - _resident_weight_bytes(c_aug, chid, cout, mat_bytes))
        batch_tile = _pick_batch_tile(
            B, N, c_aug, chid, cout,
            vmem_budget=max(budget, 0),
            multi_core=(cores >= 2),
            mat_bytes=mat_bytes,
            out_bytes=jnp.dtype(out_dtype).itemsize,
            ew_bytes=jnp.dtype(elementwise_dtype).itemsize)
    bt = batch_tile
    assert B % bt == 0
    m_blk = bt * N
    # TODO(synk): when B // bt == 1 on a 2-TC chip (v7x), one core idles; a
    # second grid axis over M needs halo handling before it can be added.

    # ---- wrapper-side layout plumbing (done once, outside the kernel) ------
    # x: (B, N, C) -> (C, B*N), plus a ones row (fc1 bias rides the MXU) and
    # zero rows up to c_aug.
    x_t = jnp.transpose(x, (2, 0, 1)).reshape(C, B * N)
    x_aug = jnp.concatenate(
        [x_t,
         jnp.ones((1, B * N), x_t.dtype),
         jnp.zeros((c_aug - C - 1, B * N), x_t.dtype)], axis=0
    ).astype(matmul_dtype)                                     # (c_aug, B*N)
    # TODO(synk): the x transpose and the final output transpose are extra HBM
    # round trips; for mem-bound shapes fold them into the adjacent kernels.

    w1_t = jnp.asarray(w1, jnp.float32).T                      # (Chid, C)
    w1_aug = jnp.concatenate(
        [w1_t,
         jnp.asarray(b1, jnp.float32).reshape(chid, 1),
         jnp.zeros((chid, c_aug - C - 1), jnp.float32)], axis=1
    ).astype(matmul_dtype)                                     # (Chid, c_aug)
    # Fold each hardswish's 1/6 into the linear op that consumes it.
    dw_c = jnp.asarray(dw, jnp.float32).reshape(9, chid).T * (1.0 / 6.0)
    bdw_c = jnp.asarray(bdw, jnp.float32).reshape(chid, 1)
    w2_t = (jnp.asarray(w2, jnp.float32).T * (1.0 / 6.0)).astype(matmul_dtype)
    b2_c = jnp.asarray(b2, jnp.float32).reshape(cout, 1)
    masks = _boundary_masks(H, W, bt)                          # (8, m_blk)

    kernel = functools.partial(_irb_kernel, W=W, ew_dtype=elementwise_dtype)

    grid_spec = pltpu.PrefetchScalarGridSpec(
        num_scalar_prefetch=0,
        grid=(B // bt,),
        in_specs=[
            pl.BlockSpec((c_aug, m_blk), lambda b: (0, b)),    # x^T (+ ones)
            pl.BlockSpec((chid, c_aug), lambda b: (0, 0)),     # w1^T (+ b1)
            pl.BlockSpec((chid, 9), lambda b: (0, 0)),         # depthwise w / 6
            pl.BlockSpec((chid, 1), lambda b: (0, 0)),         # depthwise b
            pl.BlockSpec((cout, chid), lambda b: (0, 0)),      # w2^T / 6
            pl.BlockSpec((cout, 1), lambda b: (0, 0)),         # b2
            pl.BlockSpec((8, m_blk), lambda b: (0, 0)),        # boundary masks
        ],
        out_specs=pl.BlockSpec((cout, m_blk), lambda b: (0, b)),
    )

    out_t = pl.pallas_call(
        kernel,
        out_shape=jax.ShapeDtypeStruct((cout, B * N), out_dtype),
        grid_spec=grid_spec,
        compiler_params=pltpu.CompilerParams(
            dimension_semantics=("parallel",),
            vmem_limit_bytes=vmem_limit,
        ),
    )(x_aug, w1_aug, dw_c, bdw_c, w2_t, b2_c, masks)

    # (Cout, B*N) -> (B, N, Cout): layout plumbing in XLA.
    return jnp.transpose(out_t.reshape(cout, B, N), (1, 2, 0))


# ----------------------------------------------------------------------------
# Reference
# ----------------------------------------------------------------------------
def _hardswish(x):
    return x * jnp.clip(x + 3.0, 0.0, 6.0) * (1.0 / 6.0)


def irb_reference(x, H, W, params, *, matmul_dtype=jnp.float32):
    """Pure-JAX reference matching the PyTorch IRB forward.  `matmul_dtype`
    mirrors the kernel's bf16 matmul inputs (accumulation stays f32)."""
    B, N, C = x.shape
    w1, b1, dw, bdw, w2, b2 = params
    chid = w1.shape[1]
    h = jnp.einsum("bnc,ch->bnh", x.astype(matmul_dtype),
                   jnp.asarray(w1, matmul_dtype),
                   preferred_element_type=jnp.float32) + b1
    h = _hardswish(h)
    himg = h.reshape(B, H, W, chid)
    dwk = jnp.asarray(dw, jnp.float32).reshape(3, 3, 1, chid)  # HWIO, groups=chid
    conv = lax.conv_general_dilated(
        himg, dwk, window_strides=(1, 1), padding="SAME",
        dimension_numbers=("NHWC", "HWIO", "NHWC"),
        feature_group_count=chid)
    conv = _hardswish(conv + bdw)
    h2 = conv.reshape(B, N, chid)
    out = jnp.einsum("bnh,ho->bno", h2.astype(matmul_dtype),
                     jnp.asarray(w2, matmul_dtype),
                     preferred_element_type=jnp.float32) + b2
    return out


if __name__ == "__main__":
    B, C, H, W = 2, 16, 16, 16
    N = H * W
    hidden = 32
    out_feat = C   # out_features defaults to in_features in the module

    key = jax.random.PRNGKey(0)
    ks = jax.random.split(key, 7)
    x = jax.random.normal(ks[0], (B, N, C), jnp.float32)

    # Deterministic synthetic parameters (natural NHWC-style shapes; the
    # wrapper does all kernel-layout plumbing).
    w1 = jax.random.normal(ks[1], (C, hidden), jnp.float32) * 0.1      # fc1 1x1
    b1 = jax.random.normal(ks[2], (hidden,), jnp.float32) * 0.1
    dw = jax.random.normal(ks[3], (3, 3, hidden), jnp.float32) * 0.1   # depthwise
    bdw = jax.random.normal(ks[4], (hidden,), jnp.float32) * 0.1
    w2 = jax.random.normal(ks[5], (hidden, out_feat), jnp.float32) * 0.1  # fc2 1x1
    b2 = jax.random.normal(ks[6], (out_feat,), jnp.float32) * 0.1
    params = (w1, b1, dw, bdw, w2, b2)

    out = jax.block_until_ready(irb_forward(x, H, W, params))

    # Compare against a reference with the same (bf16-input, f32-accumulate)
    # matmul precision, so the check isolates layout/algorithm correctness.
    ref = irb_reference(x, H, W, params, matmul_dtype=jnp.bfloat16)
    assert out.shape == (B, N, out_feat)
    assert jnp.allclose(out, ref, atol=5e-3, rtol=5e-3), "mismatch vs reference"

    print("KERNEL_OK")
</pallas_src>

<mosaic_0001>
module attributes {stable_mosaic.version = 11 : i64} {
  func.func @_irb_kernel(%arg0: i32, %arg1: memref<24x256xbf16, #tpu.memory_space<vmem>>, %arg2: memref<32x24xbf16, #tpu.memory_space<vmem>>, %arg3: memref<32x9xf32, #tpu.memory_space<vmem>>, %arg4: memref<32x1xf32, #tpu.memory_space<vmem>>, %arg5: memref<16x32xbf16, #tpu.memory_space<vmem>>, %arg6: memref<16x1xf32, #tpu.memory_space<vmem>>, %arg7: memref<8x256xf32, #tpu.memory_space<vmem>>, %arg8: memref<16x256xf32, #tpu.memory_space<vmem>>) attributes {dimension_semantics = [#tpu.dimension_semantics<parallel>], iteration_bounds = array<i64: 2>, scalar_prefetch = 0 : i64, scratch_operands = 0 : i64, tpu.core_type = #tpu.core_type<tc>, window_params = [{transform_indices = @transform_0, window_bounds = array<i64: 24, 256>}, {pipeline_mode = #tpu.pipeline_mode<synchronous>, transform_indices = @transform_1, window_bounds = array<i64: 32, 24>}, {pipeline_mode = #tpu.pipeline_mode<synchronous>, transform_indices = @transform_2, window_bounds = array<i64: 32, 9>}, {pipeline_mode = #tpu.pipeline_mode<synchronous>, transform_indices = @transform_3, window_bounds = array<i64: 32, 1>}, {pipeline_mode = #tpu.pipeline_mode<synchronous>, transform_indices = @transform_4, window_bounds = array<i64: 16, 32>}, {pipeline_mode = #tpu.pipeline_mode<synchronous>, transform_indices = @transform_5, window_bounds = array<i64: 16, 1>}, {pipeline_mode = #tpu.pipeline_mode<synchronous>, transform_indices = @transform_6, window_bounds = array<i64: 8, 256>}, {transform_indices = @transform_7, window_bounds = array<i64: 16, 256>}]} {
    %c0 = arith.constant 0 : index
    %c0_0 = arith.constant 0 : index
    %0 = vector.load %arg2[%c0, %c0_0] : memref<32x24xbf16, #tpu.memory_space<vmem>>, vector<32x24xbf16>
    %c0_1 = arith.constant 0 : index
    %c0_2 = arith.constant 0 : index
    %1 = vector.load %arg1[%c0_1, %c0_2] : memref<24x256xbf16, #tpu.memory_space<vmem>>, vector<24x256xbf16>
    %cst = arith.constant dense<0.000000e+00> : vector<32x256xf32>
    %2 = tpu.matmul %0, %1, %cst {dimension_numbers = #tpu.dot_dimension_numbers<[1], [0], [0], [1], [0, 0, 1, 1], [], []>} : vector<32x24xbf16>, vector<24x256xbf16>, vector<32x256xf32> -> vector<32x256xf32>
    %cst_3 = arith.constant 3.000000e+00 : f32
    %3 = vector.broadcast %cst_3 : f32 to vector<32x256xf32>
    %4 = arith.addf %2, %3 : vector<32x256xf32>
    %cst_4 = arith.constant 0.000000e+00 : f32
    %cst_5 = arith.constant 6.000000e+00 : f32
    %5 = vector.broadcast %cst_4 : f32 to vector<32x256xf32>
    %6 = arith.maximumf %5, %4 : vector<32x256xf32>
    %7 = vector.broadcast %cst_5 : f32 to vector<32x256xf32>
    %8 = arith.minimumf %7, %6 : vector<32x256xf32>
    %9 = arith.mulf %2, %8 : vector<32x256xf32>
    %c0_6 = arith.constant 0 : index
    %c0_7 = arith.constant 0 : index
    %10 = vector.load %arg3[%c0_6, %c0_7] : memref<32x9xf32, #tpu.memory_space<vmem>>, vector<32x9xf32>
    %c0_8 = arith.constant 0 : index
    %c0_9 = arith.constant 0 : index
    %11 = vector.load %arg7[%c0_8, %c0_9] : memref<8x256xf32, #tpu.memory_space<vmem>>, vector<8x256xf32>
    %12 = vector.extract_strided_slice %10 {offsets = [0, 4], sizes = [32, 1], strides = [1, 1]} : vector<32x9xf32> to vector<32x1xf32>
    %13 = vector.broadcast %12 : vector<32x1xf32> to vector<32x256xf32>
    %14 = arith.mulf %9, %13 : vector<32x256xf32>
    %c17_i32 = arith.constant 17 : i32
    %15 = tpu.dynamic_rotate %9 by %c17_i32 dim 1 : vector<32x256xf32>, i32 -> vector<32x256xf32>
    %16 = vector.extract_strided_slice %11 {offsets = [0, 0], sizes = [1, 256], strides = [1, 1]} : vector<8x256xf32> to vector<1x256xf32>
    %17 = vector.broadcast %16 : vector<1x256xf32> to vector<32x256xf32>
    %18 = arith.mulf %15, %17 : vector<32x256xf32>
    %19 = vector.extract_strided_slice %10 {offsets = [0, 0], sizes = [32, 1], strides = [1, 1]} : vector<32x9xf32> to vector<32x1xf32>
    %20 = vector.broadcast %19 : vector<32x1xf32> to vector<32x256xf32>
    %21 = arith.mulf %18, %20 : vector<32x256xf32>
    %22 = arith.addf %14, %21 : vector<32x256xf32>
    %c16_i32 = arith.constant 16 : i32
    %23 = tpu.dynamic_rotate %9 by %c16_i32 dim 1 : vector<32x256xf32>, i32 -> vector<32x256xf32>
    %24 = vector.extract_strided_slice %11 {offsets = [1, 0], sizes = [1, 256], strides = [1, 1]} : vector<8x256xf32> to vector<1x256xf32>
    %25 = vector.broadcast %24 : vector<1x256xf32> to vector<32x256xf32>
    %26 = arith.mulf %23, %25 : vector<32x256xf32>
    %27 = vector.extract_strided_slice %10 {offsets = [0, 1], sizes = [32, 1], strides = [1, 1]} : vector<32x9xf32> to vector<32x1xf32>
    %28 = vector.broadcast %27 : vector<32x1xf32> to vector<32x256xf32>
    %29 = arith.mulf %26, %28 : vector<32x256xf32>
    %30 = arith.addf %22, %29 : vector<32x256xf32>
    %c15_i32 = arith.constant 15 : i32
    %31 = tpu.dynamic_rotate %9 by %c15_i32 dim 1 : vector<32x256xf32>, i32 -> vector<32x256xf32>
    %32 = vector.extract_strided_slice %11 {offsets = [2, 0], sizes = [1, 256], strides = [1, 1]} : vector<8x256xf32> to vector<1x256xf32>
    %33 = vector.broadcast %32 : vector<1x256xf32> to vector<32x256xf32>
    %34 = arith.mulf %31, %33 : vector<32x256xf32>
    %35 = vector.extract_strided_slice %10 {offsets = [0, 2], sizes = [32, 1], strides = [1, 1]} : vector<32x9xf32> to vector<32x1xf32>
    %36 = vector.broadcast %35 : vector<32x1xf32> to vector<32x256xf32>
    %37 = arith.mulf %34, %36 : vector<32x256xf32>
    %38 = arith.addf %30, %37 : vector<32x256xf32>
    %c1_i32 = arith.constant 1 : i32
    %39 = tpu.dynamic_rotate %9 by %c1_i32 dim 1 : vector<32x256xf32>, i32 -> vector<32x256xf32>
    %40 = vector.extract_strided_slice %11 {offsets = [3, 0], sizes = [1, 256], strides = [1, 1]} : vector<8x256xf32> to vector<1x256xf32>
    %41 = vector.broadcast %40 : vector<1x256xf32> to vector<32x256xf32>
    %42 = arith.mulf %39, %41 : vector<32x256xf32>
    %43 = vector.extract_strided_slice %10 {offsets = [0, 3], sizes = [32, 1], strides = [1, 1]} : vector<32x9xf32> to vector<32x1xf32>
    %44 = vector.broadcast %43 : vector<32x1xf32> to vector<32x256xf32>
    %45 = arith.mulf %42, %44 : vector<32x256xf32>
    %46 = arith.addf %38, %45 : vector<32x256xf32>
    %c255_i32 = arith.constant 255 : i32
    %47 = tpu.dynamic_rotate %9 by %c255_i32 dim 1 : vector<32x256xf32>, i32 -> vector<32x256xf32>
    %48 = vector.extract_strided_slice %11 {offsets = [4, 0], sizes = [1, 256], strides = [1, 1]} : vector<8x256xf32> to vector<1x256xf32>
    %49 = vector.broadcast %48 : vector<1x256xf32> to vector<32x256xf32>
    %50 = arith.mulf %47, %49 : vector<32x256xf32>
    %51 = vector.extract_strided_slice %10 {offsets = [0, 5], sizes = [32, 1], strides = [1, 1]} : vector<32x9xf32> to vector<32x1xf32>
    %52 = vector.broadcast %51 : vector<32x1xf32> to vector<32x256xf32>
    %53 = arith.mulf %50, %52 : vector<32x256xf32>
    %54 = arith.addf %46, %53 : vector<32x256xf32>
    %c241_i32 = arith.constant 241 : i32
    %55 = tpu.dynamic_rotate %9 by %c241_i32 dim 1 : vector<32x256xf32>, i32 -> vector<32x256xf32>
    %56 = vector.extract_strided_slice %11 {offsets = [5, 0], sizes = [1, 256], strides = [1, 1]} : vector<8x256xf32> to vector<1x256xf32>
    %57 = vector.broadcast %56 : vector<1x256xf32> to vector<32x256xf32>
    %58 = arith.mulf %55, %57 : vector<32x256xf32>
    %59 = vector.extract_strided_slice %10 {offsets = [0, 6], sizes = [32, 1], strides = [1, 1]} : vector<32x9xf32> to vector<32x1xf32>
    %60 = vector.broadcast %59 : vector<32x1xf32> to vector<32x256xf32>
    %61 = arith.mulf %58, %60 : vector<32x256xf32>
    %62 = arith.addf %54, %61 : vector<32x256xf32>
    %c240_i32 = arith.constant 240 : i32
    %63 = tpu.dynamic_rotate %9 by %c240_i32 dim 1 : vector<32x256xf32>, i32 -> vector<32x256xf32>
    %64 = vector.extract_strided_slice %11 {offsets = [6, 0], sizes = [1, 256], strides = [1, 1]} : vector<8x256xf32> to vector<1x256xf32>
    %65 = vector.broadcast %64 : vector<1x256xf32> to vector<32x256xf32>
    %66 = arith.mulf %63, %65 : vector<32x256xf32>
    %67 = vector.extract_strided_slice %10 {offsets = [0, 7], sizes = [32, 1], strides = [1, 1]} : vector<32x9xf32> to vector<32x1xf32>
    %68 = vector.broadcast %67 : vector<32x1xf32> to vector<32x256xf32>
    %69 = arith.mulf %66, %68 : vector<32x256xf32>
    %70 = arith.addf %62, %69 : vector<32x256xf32>
    %c239_i32 = arith.constant 239 : i32
    %71 = tpu.dynamic_rotate %9 by %c239_i32 dim 1 : vector<32x256xf32>, i32 -> vector<32x256xf32>
    %72 = vector.extract_strided_slice %11 {offsets = [7, 0], sizes = [1, 256], strides = [1, 1]} : vector<8x256xf32> to vector<1x256xf32>
    %73 = vector.broadcast %72 : vector<1x256xf32> to vector<32x256xf32>
    %74 = arith.mulf %71, %73 : vector<32x256xf32>
    %75 = vector.extract_strided_slice %10 {offsets = [0, 8], sizes = [32, 1], strides = [1, 1]} : vector<32x9xf32> to vector<32x1xf32>
    %76 = vector.broadcast %75 : vector<32x1xf32> to vector<32x256xf32>
    %77 = arith.mulf %74, %76 : vector<32x256xf32>
    %78 = arith.addf %70, %77 : vector<32x256xf32>
    %c0_10 = arith.constant 0 : index
    %c0_11 = arith.constant 0 : index
    %79 = vector.load %arg4[%c0_10, %c0_11] : memref<32x1xf32, #tpu.memory_space<vmem>>, vector<32x1xf32>
    %80 = vector.broadcast %79 : vector<32x1xf32> to vector<32x256xf32>
    %81 = arith.addf %78, %80 : vector<32x256xf32>
    %cst_12 = arith.constant 3.000000e+00 : f32
    %82 = vector.broadcast %cst_12 : f32 to vector<32x256xf32>
    %83 = arith.addf %81, %82 : vector<32x256xf32>
    %cst_13 = arith.constant 0.000000e+00 : f32
    %cst_14 = arith.constant 6.000000e+00 : f32
    %84 = vector.broadcast %cst_13 : f32 to vector<32x256xf32>
    %85 = arith.maximumf %84, %83 : vector<32x256xf32>
    %86 = vector.broadcast %cst_14 : f32 to vector<32x256xf32>
    %87 = arith.minimumf %86, %85 : vector<32x256xf32>
    %88 = arith.mulf %81, %87 : vector<32x256xf32>
    %c0_15 = arith.constant 0 : index
    %c0_16 = arith.constant 0 : index
    %89 = vector.load %arg5[%c0_15, %c0_16] : memref<16x32xbf16, #tpu.memory_space<vmem>>, vector<16x32xbf16>
    %90 = arith.truncf %88 : vector<32x256xf32> to vector<32x256xbf16>
    %cst_17 = arith.constant dense<0.000000e+00> : vector<16x256xf32>
    %91 = tpu.matmul %89, %90, %cst_17 {dimension_numbers = #tpu.dot_dimension_numbers<[1], [0], [0], [1], [0, 0, 1, 1], [], []>} : vector<16x32xbf16>, vector<32x256xbf16>, vector<16x256xf32> -> vector<16x256xf32>
    %c0_18 = arith.constant 0 : index
    %c0_19 = arith.constant 0 : index
    %92 = vector.load %arg6[%c0_18, %c0_19] : memref<16x1xf32, #tpu.memory_space<vmem>>, vector<16x1xf32>
    %93 = vector.broadcast %92 : vector<16x1xf32> to vector<16x256xf32>
    %94 = arith.addf %91, %93 : vector<16x256xf32>
    %c0_20 = arith.constant 0 : index
    %c0_21 = arith.constant 0 : index
    %95 = vector.load %arg8[%c0_20, %c0_21] : memref<16x256xf32, #tpu.memory_space<vmem>>, vector<16x256xf32>
    tpu.vector_store %arg8[%c0_20, %c0_21], %94 {strides = array<i32>} : memref<16x256xf32, #tpu.memory_space<vmem>>, vector<16x256xf32>,
    return
  }
  func.func @transform_0(%arg0: i32) -> (i32, i32) {
    %c0_i32 = arith.constant 0 : i32
    %c0_i32_0 = arith.constant 0 : i32
    return %c0_i32, %arg0 : i32, i32
  }
  func.func @transform_1(%arg0: i32) -> (i32, i32) {
    %c0_i32 = arith.constant 0 : i32
    %c0_i32_0 = arith.constant 0 : i32
    %c0_i32_1 = arith.constant 0 : i32
    return %c0_i32, %c0_i32_0 : i32, i32
  }
  func.func @transform_2(%arg0: i32) -> (i32, i32) {
    %c0_i32 = arith.constant 0 : i32
    %c0_i32_0 = arith.constant 0 : i32
    %c0_i32_1 = arith.constant 0 : i32
    return %c0_i32, %c0_i32_0 : i32, i32
  }
  func.func @transform_3(%arg0: i32) -> (i32, i32) {
    %c0_i32 = arith.constant 0 : i32
    %c0_i32_0 = arith.constant 0 : i32
    %c0_i32_1 = arith.constant 0 : i32
    return %c0_i32, %c0_i32_0 : i32, i32
  }
  func.func @transform_4(%arg0: i32) -> (i32, i32) {
    %c0_i32 = arith.constant 0 : i32
    %c0_i32_0 = arith.constant 0 : i32
    %c0_i32_1 = arith.constant 0 : i32
    return %c0_i32, %c0_i32_0 : i32, i32
  }
  func.func @transform_5(%arg0: i32) -> (i32, i32) {
    %c0_i32 = arith.constant 0 : i32
    %c0_i32_0 = arith.constant 0 : i32
    %c0_i32_1 = arith.constant 0 : i32
    return %c0_i32, %c0_i32_0 : i32, i32
  }
  func.func @transform_6(%arg0: i32) -> (i32, i32) {
    %c0_i32 = arith.constant 0 : i32
    %c0_i32_0 = arith.constant 0 : i32
    %c0_i32_1 = arith.constant 0 : i32
    return %c0_i32, %c0_i32_0 : i32, i32
  }
  func.func @transform_7(%arg0: i32) -> (i32, i32) {
    %c0_i32 = arith.constant 0 : i32
    %c0_i32_0 = arith.constant 0 : i32
    return %c0_i32, %arg0 : i32, i32
  }
}

</mosaic_0001>

<llo_original>
// kernel: tpu_custom_call.1
$region0: #{tpu_custom_call.1}
  #allocation0 [shape = 'u32[]', space=smem, size = 0x4, offset = 0x4, fixed_abs, tag = 'smem constant byte address 0x4 - core index']
  #allocation1 [shape = 'u32[144,128]{1,0:T(1,128)}', space=vmem, size = 0x12000, scoped, tag = 'internal scratch']
  %s0 = inlined_call_operand.vmem [shape: bf16[24,512], index: 0, kind: input, shape index: {}]
  %s1 = inlined_call_operand.vmem [shape: bf16[32,24], index: 1, kind: input, shape index: {}]
  %s2 = inlined_call_operand.vmem [shape: f32[32,9], index: 2, kind: input, shape index: {}]
  %s3 = inlined_call_operand.vmem [shape: f32[32,1], index: 3, kind: input, shape index: {}]
  %s4 = inlined_call_operand.vmem [shape: bf16[16,32], index: 4, kind: input, shape index: {}]
  %s5 = inlined_call_operand.vmem [shape: f32[16,1], index: 5, kind: input, shape index: {}]
  %s6 = inlined_call_operand.vmem [shape: f32[8,256], index: 6, kind: input, shape index: {}]
  %s7 = inlined_call_operand.hbm [shape: f32[16,512], index: 7, kind: output, shape index: {}]
  %s8 = sld [smem:[#allocation0]]
  $region99: #{tpu_custom_call.1} parent=0
    _
  %s10 = ssub.s32 1, %s8
  %s11 = scalar_select 0, %s10, %s8
  $region1: #{tpu_custom_call.1} parent=0
    #allocation2 [shape = 'u8[24576]{0}', space=vmem, size = 0x6000, scoped, tag = 'input window, operand 0']
    #allocation3 [shape = 'u8[32768]{0}', space=vmem, size = 0x8000, scoped, tag = 'output window, operand 0']
    #allocation4 [shape = 's32[2]{0}', space=sflag, size = 0x8, scoped, tag = 'scoped memory for tpu_custom_call.1']
    %12 = vsyncpa [#allocation4], 0
    %s13 = scalar_lea.sflag [#allocation4], 1
    %14 = vsyncpa %s13, 0
    loop: start=0, step=1, limit=4
    $region2: #{tpu_custom_call.1} parent=1 // loop_pre_header
      _
    $region3: #{tpu_custom_call.1} parent=1 // loop_header
      %s16 = sphi 0, %s20
      %p17 = scmp.ge.s32.totalorder %s16, 4
      %s26 = sphi 0, %s28
      %s29 = sphi 0, %s26
      %s30 = sphi 0, %s29
      %s46 = sphi 0, %s30
      %s50 = sphi 0, %s50
      %s52 = sphi 0, %s50
      %s53 = sphi 0, %s52
      %s67 = sphi 0, %s53
      %s71 = sphi 0, %s71
      %s73 = sphi 0, %s71
      %s74 = sphi 0, %s73
      %s88 = sphi 0, %s74
      %s92 = sphi 0, %s92
      %s94 = sphi 0, %s92
      %s95 = sphi 0, %s94
      %s109 = sphi 0, %s95
      %s113 = sphi 0, %s113
      %s115 = sphi 0, %s113
      %s116 = sphi 0, %s115
      %s130 = sphi 0, %s116
      %s134 = sphi 0, %s134
      %s136 = sphi 0, %s134
      %s137 = sphi 0, %s136
      %s151 = sphi 0, %s137
      %s155 = sphi 0, %s155
      %s157 = sphi 0, %s155
      %s158 = sphi 0, %s157
      %s172 = sphi 0, %s158
      %s178 = sphi 0, %s180
      %s181 = sphi 0, %s178
      %s182 = sphi 0, %s181
      %s198 = sphi 0, %s182
    $region4: #{tpu_custom_call.1} parent=1 // loop_header_branch
      %19 = sbr.rel (%p17) target = $region8
    $region5: #{tpu_custom_call.1} parent=1 // loop_body
      %s21 = ssub.s32 %s16, 1
      %s22 = ssub.s32 %s16, 2
      %s23 = sadd.s32 %s16, 1
      %s24 = ssub.s32 %s16, %s23
      %p25 = scmp.eq.s32.totalorder %s24, 0
      %s27 = sadd.s32 %s26, 1
      %s28 = scalar_select %p25, %s26, %s27
      %p31 = pneg %p25
      %p32 = scmp.eq.s32.totalorder %s16, 1
      %p33 = por %p31, %p32
      %p34 = scmp.ne.s32.totalorder %s26, %s29
      %p35 = scmp.eq.s32.totalorder %s16, 0
      %p36 = por %p34, %p35
      %p37 = scmp.ne.s32.totalorder %s26, %s29
      %p38 = scmp.eq.s32.totalorder %s21, 1
      %p39 = por %p37, %p38
      %p40 = scmp.ne.s32.totalorder %s29, %s30
      %p41 = scmp.eq.s32.totalorder %s21, 0
      %p42 = por %p40, %p41
      %p43 = scmp.ne.s32.totalorder %s29, %s30
      %p44 = scmp.eq.s32.totalorder %s22, 1
      %p45 = por %p43, %p44
      %p47 = scmp.ne.s32.totalorder %s30, %s46
      %p48 = scmp.eq.s32.totalorder %s22, 0
      %p49 = por %p47, %p48
      %s51 = sadd.s32 %s50, 1
      %p54 = scmp.eq.s32.totalorder %s16, 1
      %p55 = scmp.ne.s32.totalorder %s50, %s52
      %p56 = scmp.eq.s32.totalorder %s16, 0
      %p57 = por %p55, %p56
      %p58 = scmp.ne.s32.totalorder %s50, %s52
      %p59 = scmp.eq.s32.totalorder %s21, 1
      %p60 = por %p58, %p59
      %p61 = scmp.ne.s32.totalorder %s52, %s53
      %p62 = scmp.eq.s32.totalorder %s21, 0
      %p63 = por %p61, %p62
      %p64 = scmp.ne.s32.totalorder %s52, %s53
      %p65 = scmp.eq.s32.totalorder %s22, 1
      %p66 = por %p64, %p65
      %p68 = scmp.ne.s32.totalorder %s53, %s67
      %p69 = scmp.eq.s32.totalorder %s22, 0
      %p70 = por %p68, %p69
      %s72 = sadd.s32 %s71, 1
      %p75 = scmp.eq.s32.totalorder %s16, 1
      %p76 = scmp.ne.s32.totalorder %s71, %s73
      %p77 = scmp.eq.s32.totalorder %s16, 0
      %p78 = por %p76, %p77
      %p79 = scmp.ne.s32.totalorder %s71, %s73
      %p80 = scmp.eq.s32.totalorder %s21, 1
      %p81 = por %p79, %p80
      %p82 = scmp.ne.s32.totalorder %s73, %s74
      %p83 = scmp.eq.s32.totalorder %s21, 0
      %p84 = por %p82, %p83
      %p85 = scmp.ne.s32.totalorder %s73, %s74
      %p86 = scmp.eq.s32.totalorder %s22, 1
      %p87 = por %p85, %p86
      %p89 = scmp.ne.s32.totalorder %s74, %s88
      %p90 = scmp.eq.s32.totalorder %s22, 0
      %p91 = por %p89, %p90
      %s93 = sadd.s32 %s92, 1
      %p96 = scmp.eq.s32.totalorder %s16, 1
      %p97 = scmp.ne.s32.totalorder %s92, %s94
      %p98 = scmp.eq.s32.totalorder %s16, 0
      %p99 = por %p97, %p98
      %p100 = scmp.ne.s32.totalorder %s92, %s94
      %p101 = scmp.eq.s32.totalorder %s21, 1
      %p102 = por %p100, %p101
      %p103 = scmp.ne.s32.totalorder %s94, %s95
      %p104 = scmp.eq.s32.totalorder %s21, 0
      %p105 = por %p103, %p104
      %p106 = scmp.ne.s32.totalorder %s94, %s95
      %p107 = scmp.eq.s32.totalorder %s22, 1
      %p108 = por %p106, %p107
      %p110 = scmp.ne.s32.totalorder %s95, %s109
      %p111 = scmp.eq.s32.totalorder %s22, 0
      %p112 = por %p110, %p111
      %s114 = sadd.s32 %s113, 1
      %p117 = scmp.eq.s32.totalorder %s16, 1
      %p118 = scmp.ne.s32.totalorder %s113, %s115
      %p119 = scmp.eq.s32.totalorder %s16, 0
      %p120 = por %p118, %p119
      %p121 = scmp.ne.s32.totalorder %s113, %s115
      %p122 = scmp.eq.s32.totalorder %s21, 1
      %p123 = por %p121, %p122
      %p124 = scmp.ne.s32.totalorder %s115, %s116
      %p125 = scmp.eq.s32.totalorder %s21, 0
      %p126 = por %p124, %p125
      %p127 = scmp.ne.s32.totalorder %s115, %s116
      %p128 = scmp.eq.s32.totalorder %s22, 1
      %p129 = por %p127, %p128
      %p131 = scmp.ne.s32.totalorder %s116, %s130
      %p132 = scmp.eq.s32.totalorder %s22, 0
      %p133 = por %p131, %p132
      %s135 = sadd.s32 %s134, 1
      %p138 = scmp.eq.s32.totalorder %s16, 1
      %p139 = scmp.ne.s32.totalorder %s134, %s136
      %p140 = scmp.eq.s32.totalorder %s16, 0
      %p141 = por %p139, %p140
      %p142 = scmp.ne.s32.totalorder %s134, %s136
      %p143 = scmp.eq.s32.totalorder %s21, 1
      %p144 = por %p142, %p143
      %p145 = scmp.ne.s32.totalorder %s136, %s137
      %p146 = scmp.eq.s32.totalorder %s21, 0
      %p147 = por %p145, %p146
      %p148 = scmp.ne.s32.totalorder %s136, %s137
      %p149 = scmp.eq.s32.totalorder %s22, 1
      %p150 = por %p148, %p149
      %p152 = scmp.ne.s32.totalorder %s137, %s151
      %p153 = scmp.eq.s32.totalorder %s22, 0
      %p154 = por %p152, %p153
      %s156 = sadd.s32 %s155, 1
      %p159 = scmp.eq.s32.totalorder %s16, 1
      %p160 = scmp.ne.s32.totalorder %s155, %s157
      %p161 = scmp.eq.s32.totalorder %s16, 0
      %p162 = por %p160, %p161
      %p163 = scmp.ne.s32.totalorder %s155, %s157
      %p164 = scmp.eq.s32.totalorder %s21, 1
      %p165 = por %p163, %p164
      %p166 = scmp.ne.s32.totalorder %s157, %s158
      %p167 = scmp.eq.s32.totalorder %s21, 0
      %p168 = por %p166, %p167
      %p169 = scmp.ne.s32.totalorder %s157, %s158
      %p170 = scmp.eq.s32.totalorder %s22, 1
      %p171 = por %p169, %p170
      %p173 = scmp.ne.s32.totalorder %s158, %s172
      %p174 = scmp.eq.s32.totalorder %s22, 0
      %p175 = por %p173, %p174
      %s176 = ssub.s32 %s16, %s23
      %p177 = scmp.eq.s32.totalorder %s176, 0
      %s179 = sadd.s32 %s178, 1
      %s180 = scalar_select %p177, %s178, %s179
      %p183 = pneg %p177
      %p184 = scmp.eq.s32.totalorder %s16, 1
      %p185 = por %p183, %p184
      %p186 = scmp.ne.s32.totalorder %s178, %s181
      %p187 = scmp.eq.s32.totalorder %s16, 0
      %p188 = por %p186, %p187
      %p189 = scmp.ne.s32.totalorder %s178, %s181
      %p190 = scmp.eq.s32.totalorder %s21, 1
      %p191 = por %p189, %p190
      %p192 = scmp.ne.s32.totalorder %s181, %s182
      %p193 = scmp.eq.s32.totalorder %s21, 0
      %p194 = por %p192, %p193
      %p195 = scmp.ne.s32.totalorder %s181, %s182
      %p196 = scmp.eq.s32.totalorder %s22, 1
      %p197 = por %p195, %p196
      %p199 = scmp.ne.s32.totalorder %s182, %s198
      %p200 = scmp.eq.s32.totalorder %s22, 0
      %p201 = por %p199, %p200
      %p202 = scmp.le.s32.totalorder 1, %s16
      %p203 = scmp.lt.s32.totalorder %s16, 3
      %p204 = pnand %p202, %p203
      %p205 = pneg %p204
      // Predicated region
      $region9: #{tpu_custom_call.1} parent=5 // pred_check
        _
      $region10: #{tpu_custom_call.1} parent=5 // pred_check_branch
        %207 = sbr.rel (%p204) target = $region12
      $region11: #{tpu_custom_call.1} parent=5 // pred_region
        %s208 = ssub.s32 %s16, 1
        // Predicated region
        $region13: #{tpu_custom_call.1} parent=11 // pred_check
          %p209 = pneg %p63
        $region14: #{tpu_custom_call.1} parent=11 // pred_check_branch
          %211 = sbr.rel (%p209) target = $region16
        $region15: #{tpu_custom_call.1} parent=11 // pred_region
          _
        $region16: #{tpu_custom_call.1} parent=11 // pred_fallthru
          _
        // Predicated region
        $region17: #{tpu_custom_call.1} parent=11 // pred_check
          %p212 = pneg %p84
        $region18: #{tpu_custom_call.1} parent=11 // pred_check_branch
          %214 = sbr.rel (%p212) target = $region20
        $region19: #{tpu_custom_call.1} parent=11 // pred_region
          _
        $region20: #{tpu_custom_call.1} parent=11 // pred_fallthru
          _
        // Predicated region
        $region21: #{tpu_custom_call.1} parent=11 // pred_check
          %p215 = pneg %p105
        $region22: #{tpu_custom_call.1} parent=11 // pred_check_branch
          %217 = sbr.rel (%p215) target = $region24
        $region23: #{tpu_custom_call.1} parent=11 // pred_region
          _
        $region24: #{tpu_custom_call.1} parent=11 // pred_fallthru
          _
        // Predicated region
        $region25: #{tpu_custom_call.1} parent=11 // pred_check
          %p218 = pneg %p126
        $region26: #{tpu_custom_call.1} parent=11 // pred_check_branch
          %220 = sbr.rel (%p218) target = $region28
        $region27: #{tpu_custom_call.1} parent=11 // pred_region
          _
        $region28: #{tpu_custom_call.1} parent=11 // pred_fallthru
          _
        // Predicated region
        $region29: #{tpu_custom_call.1} parent=11 // pred_check
          %p221 = pneg %p147
        $region30: #{tpu_custom_call.1} parent=11 // pred_check_branch
          %223 = sbr.rel (%p221) target = $region32
        $region31: #{tpu_custom_call.1} parent=11 // pred_region
          _
        $region32: #{tpu_custom_call.1} parent=11 // pred_fallthru
          _
        // Predicated region
        $region33: #{tpu_custom_call.1} parent=11 // pred_check
          %p224 = pneg %p168
        $region34: #{tpu_custom_call.1} parent=11 // pred_check_branch
          %226 = sbr.rel (%p224) target = $region36
        $region35: #{tpu_custom_call.1} parent=11 // pred_region
          _
        $region36: #{tpu_custom_call.1} parent=11 // pred_fallthru
          _
      $region12: #{tpu_custom_call.1} parent=5 // pred_fallthru
        _
      %p227 = scmp.lt.s32.totalorder %s16, 2
      // Predicated region
      $region37: #{tpu_custom_call.1} parent=5 // pred_check
        %p228 = pneg %p227
      $region38: #{tpu_custom_call.1} parent=5 // pred_check_branch
        %230 = sbr.rel (%p228) target = $region40
      $region39: #{tpu_custom_call.1} parent=5 // pred_region
        // Predicated region
        $region41: #{tpu_custom_call.1} parent=39 // pred_check
          %p231 = pneg %p36
        $region42: #{tpu_custom_call.1} parent=39 // pred_check_branch
          %233 = sbr.rel (%p231) target = $region44
        $region43: #{tpu_custom_call.1} parent=39 // pred_region
          %s234 = sand.u32 %s26, 1
          %s235 = sand.u32 %s26, 1
          %s236 = smul.addr %s235, 24
          %s237 = scalar_lea.vmem [#allocation2], %s236
          %s238 = smul.u32 2, %s16
          %s239 = smul.addr %s238, 4
          %s240 = scalar_lea.vmem %s0, %s239
          // Predicated region
          $region45: #{tpu_custom_call.1} parent=43 // pred_check
            _
          $region46: #{tpu_custom_call.1} parent=43 // pred_check_branch
            %242 = sbr.rel (0) target = $region48
          $region47: #{tpu_custom_call.1} parent=43 // pred_region
            // Predicated region
            $region49: #{tpu_custom_call.1} parent=47 // pred_check
              _
            $region50: #{tpu_custom_call.1} parent=47 // pred_check_branch
              %244 = sbr.rel (0) target = $region52
            $region51: #{tpu_custom_call.1} parent=47 // pred_region
              // Predicated region
              $region64: #{tpu_custom_call.1} parent=51 // pred_check
                _
              $region65: #{tpu_custom_call.1} parent=51 // pred_check_branch
                %264 = sbr.rel (0) target = $region67
              $region66: #{tpu_custom_call.1} parent=51 // pred_region
                loop: start=0, step=1, limit=1
                $region68: #{tpu_custom_call.1} parent=66 // loop_pre_header
                  _
                $region69: #{tpu_custom_call.1} parent=66 // loop_header
                  %s266 = sphi 0, %s270
                  %p267 = scmp.ge.s32.totalorder %s266, 1
                  %s271 = sphi %s240, %s240
                  %s272 = sphi %s237, %s237
                $region70: #{tpu_custom_call.1} parent=66 // loop_header_branch
                  %269 = sbr.rel (%p267) target = $region74
                $region71: #{tpu_custom_call.1} parent=66 // loop_body
                  %v273 = vld [vmem:[%s271] sm:$0xff]
                  %274 = vst [vmem:[%s272] sm:$0xff] %v273
                  %v275 = vld [vmem:[%s271 + $0x10] sm:$0xff]
                  %276 = vst [vmem:[%s272 + $0x8] sm:$0xff] %v275
                  %v277 = vld [vmem:[%s271 + $0x20] sm:$0xff]
                  %278 = vst [vmem:[%s272 + $0x10] sm:$0xff] %v277
                $region72: #{tpu_custom_call.1} parent=66 // loop_footer
                  %s270 = sadd.s32 1, %s266
                $region73: #{tpu_custom_call.1} parent=66 // loop_footer_branch
                  %265 = sbr.rel target = $region69
                $region74: #{tpu_custom_call.1} parent=66 // loop_exit
                  _
              $region67: #{tpu_custom_call.1} parent=51 // pred_fallthru
                _
              // Predicated region
              $region75: #{tpu_custom_call.1} parent=51 // pred_check
                _
              $region76: #{tpu_custom_call.1} parent=51 // pred_check_branch
                %280 = sbr.rel target = $region78
              $region77: #{tpu_custom_call.1} parent=51 // pred_region
                _
              $region78: #{tpu_custom_call.1} parent=51 // pred_fallthru
                _
            $region52: #{tpu_custom_call.1} parent=47 // pred_fallthru
              _
            // Predicated region
            $region53: #{tpu_custom_call.1} parent=47 // pred_check
              _
            $region54: #{tpu_custom_call.1} parent=47 // pred_check_branch
              %246 = sbr.rel target = $region56
            $region55: #{tpu_custom_call.1} parent=47 // pred_region
              %s248 = ssub.s32 256, 1
              loop: start=0, step=1, limit=1
              $region57: #{tpu_custom_call.1} parent=55 // loop_pre_header
                _
              $region58: #{tpu_custom_call.1} parent=55 // loop_header
                %s250 = sphi 0, %s254
                %p251 = scmp.ge.s32.totalorder %s250, 1
                %s255 = sphi %s240, %s240
                %s256 = sphi %s237, %s237
              $region59: #{tpu_custom_call.1} parent=55 // loop_header_branch
                %253 = sbr.rel (%p251) target = $region63
              $region60: #{tpu_custom_call.1} parent=55 // loop_body
                %v257 = vld [vmem:[%s255] sm:%s248]
                %258 = vst [vmem:[%s256] sm:%s248] %v257
                %v259 = vld [vmem:[%s255 + $0x10] sm:%s248]
                %260 = vst [vmem:[%s256 + $0x8] sm:%s248] %v259
                %v261 = vld [vmem:[%s255 + $0x20] sm:%s248]
                %262 = vst [vmem:[%s256 + $0x10] sm:%s248] %v261
              $region61: #{tpu_custom_call.1} parent=55 // loop_footer
                %s254 = sadd.s32 1, %s250
              $region62: #{tpu_custom_call.1} parent=55 // loop_footer_branch
                %249 = sbr.rel target = $region58
              $region63: #{tpu_custom_call.1} parent=55 // loop_exit
                _
            $region56: #{tpu_custom_call.1} parent=47 // pred_fallthru
              _
          $region48: #{tpu_custom_call.1} parent=43 // pred_fallthru
            _
          %281 = vnop
        $region44: #{tpu_custom_call.1} parent=39 // pred_fallthru
          _
      $region40: #{tpu_custom_call.1} parent=5 // pred_fallthru
        _
      %p282 = scmp.le.s32.totalorder 1, %s16
      %p283 = scmp.lt.s32.totalorder %s16, 3
      %p284 = pnand %p282, %p283
      %p285 = pneg %p284
      // Predicated region
      $region79: #{tpu_custom_call.1} parent=5 // pred_check
        _
      $region80: #{tpu_custom_call.1} parent=5 // pred_check_branch
        %287 = sbr.rel (%p284) target = $region82
      $region81: #{tpu_custom_call.1} parent=5 // pred_region
        %s288 = ssub.s32 %s16, 1
        %s289 = sand.u32 %s29, 1
        %s290 = sand.u32 %s29, 1
        %s291 = smul.addr %s290, 24
        %s292 = scalar_lea.vmem [#allocation2], %s291
        // Predicated region
        $region83: #{tpu_custom_call.1} parent=81 // pred_check
          %p293 = pneg %p42
        $region84: #{tpu_custom_call.1} parent=81 // pred_check_branch
          %295 = sbr.rel (%p293) target = $region86
        $region85: #{tpu_custom_call.1} parent=81 // pred_region
          _
        $region86: #{tpu_custom_call.1} parent=81 // pred_fallthru
          _
        %s296 = sand.u32 %s29, 1
        %s297 = sand.u32 %s29, 1
        %s298 = smul.addr %s297, 24
        %s299 = scalar_lea.vmem [#allocation2], %s298
        %p300 = pneg %p42
        %p301 = pneg %p39
        %p302 = pneg %p63
        %p303 = pneg %p60
        %p304 = pneg %p84
        %p305 = pneg %p81
        %p306 = pneg %p105
        %p307 = pneg %p102
        %p308 = pneg %p126
        %p309 = pneg %p123
        %p310 = pneg %p147
        %p311 = pneg %p144
        %p312 = pneg %p168
        %p313 = pneg %p165
        %p314 = pneg %p194
        %p315 = pneg %p191
        %s316 = sand.u32 %s181, 1
        %s317 = scalar_lea.sflag [#allocation4], %s316
        %s318 = sand.u32 %s181, 1
        %s319 = smul.addr %s318, 32
        %s320 = scalar_lea.vmem [#allocation3], %s319
        %s321 = smul.u32 2, %s21
        %s322 = smul.u32 2, %s21
        %v324 = vld [vmem:[%s1] sm:$0xf]
        %v325 = vld [vmem:[%s1 + $0x4] sm:$0xf]
        %v326 = vld [vmem:[%s1 + $0x8] sm:$0xf]
        %v327 = vld [vmem:[%s1 + $0xc] sm:$0xf]
        %v328 = vld [vmem:[%s292] sm:$0xff]
        %v329 = vld [vmem:[%s292 + $0x8] sm:$0xff]
        %v330 = vld [vmem:[%s292 + $0x10] sm:$0xff]
        %v335 = vunpack.c.l.b16 %v324
        %v336 = vunpack.c.l.b16 %v325
        %v337 = vunpack.c.l.b16 %v326
        %v338 = vunpack.c.l.b16 %v327
        %v339 = vpack.c.b16 %v336, %v335
        %v340 = vpack.c.b16 %v338, %v337
        %v344 = vunpack.c.l.b16 %v328
        %v345 = vunpack.c.h.b16 %v328
        %v346 = vunpack.c.l.b16 %v329
        %v347 = vunpack.c.h.b16 %v329
        %v348 = vunpack.c.l.b16 %v330
        %v349 = vunpack.c.h.b16 %v330
        %v350 = vpack.c.b16 %v346, %v344
        %v351 = vpack.c.b16 %v347, %v345
        %v352 = vpack.c.b16 %v348, %v348
        %v353 = vpack.c.b16 %v349, %v349
        %vm356 = vcmask 195584
        %v358 = vsel %vm356, %v339, 0
        %v361 = vsel %vm356, %v340, 0
        %vm363 = vcmask 1043456
        %v365 = vsel %vm363, %v352, 0
        %v368 = vsel %vm363, %v353, 0
        %370 = vmatprep.subr.bf16.mxu0 0
        %371 = vmatpush1.bf16.msra.mxu0 0
        %372 = vmatprep.subr.bf16.mxu0 0
        %373 = vmatpush1.bf16.msra.mxu0 0
        %374 = vmatprep.subr.bf16.mxu0 0
        %375 = vmatpush1.bf16.msra.mxu0 0
        %376 = vmatprep.subr.bf16.mxu0 0
        %377 = vmatpush1.bf16.msra.mxu0 0
        %378 = vmatprep.subr.bf16.mxu0 0
        %379 = vmatpush1.bf16.msra.mxu0 0
        %380 = vmatprep.subr.bf16.mxu0 0
        %381 = vmatpush1.bf16.msra.mxu0 0
        %382 = vmatprep.subr.bf16.mxu0 %v368
        %383 = vmatpush1.bf16.msra.mxu0 %v365
        %384 = vmatprep.subr.bf16.mxu0 %v351
        %385 = vmatpush1.bf16.msra.mxu0 %v350
        %386 = vmatprep.subr.bf16.mxu0 0
        %387 = vmatpush2.bf16.msra.mxu0 0
        %388 = vmatprep.subr.bf16.mxu0 0
        %389 = vmatpush2.bf16.msra.mxu0 0
        %390 = vmatprep.subr.bf16.mxu0 0
        %391 = vmatpush2.bf16.msra.mxu0 0
        %392 = vmatprep.subr.bf16.mxu0 0
        %393 = vmatpush2.bf16.msra.mxu0 0
        %394 = vmatprep.subr.bf16.mxu0 0
        %395 = vmatpush2.bf16.msra.mxu0 0
        %396 = vmatprep.subr.bf16.mxu0 0
        %397 = vmatpush2.bf16.msra.mxu0 0
        %398 = vmatprep.subr.bf16.mxu0 0
        %399 = vmatpush2.bf16.msra.mxu0 0
        %400 = vmatprep.subr.bf16.mxu0 0
        %401 = vmatpush2.bf16.msra.mxu0 0
        %402 = vmatprep.mubr.bf16.mxu0 0
        %403 = vmatmul.mubr.bf16.gmra.mxu0 %v358
        %v404 = vpop.f32.mrf.mxu0
        %v405 = vadd.f32 0.0, %v404
        %v406 = vpop.f32.mrf.mxu0
        %v407 = vadd.f32 0.0, %v406
        %v408 = vpop.f32.mrf.mxu0
        %v409 = vadd.f32 0.0, %v408
        %v410 = vpop.f32.mrf.mxu0
        %v411 = vadd.f32 0.0, %v410
        %412 = vmatprep.mubr.bf16.mxu0 0
        %413 = vmatmul.mubr.bf16.gmra.mxu0 %v361
        %v414 = vpop.f32.mrf.mxu0
        %v415 = vadd.f32 0.0, %v414
        %v416 = vpop.f32.mrf.mxu0
        %v417 = vadd.f32 0.0, %v416
        %v418 = vpop.f32.mrf.mxu0
        %v419 = vadd.f32 0.0, %v418
        %v420 = vpop.f32.mrf.mxu0
        %v421 = vadd.f32 0.0, %v420
        %422 = vdwg.mxu0
        %v423 = vadd.f32 %v405, 3.0
        %v424 = vadd.f32 %v407, 3.0
        %v425 = vadd.f32 %v409, 3.0
        %v426 = vadd.f32 %v411, 3.0
        %v427 = vadd.f32 %v415, 3.0
        %v428 = vadd.f32 %v417, 3.0
        %v429 = vadd.f32 %v419, 3.0
        %v430 = vadd.f32 %v421, 3.0
        %v431 = vmax.f32 %v423, 0.0
        %v432 = vmax.f32 %v424, 0.0
        %v433 = vmax.f32 %v425, 0.0
        %v434 = vmax.f32 %v426, 0.0
        %v435 = vmax.f32 %v427, 0.0
        %v436 = vmax.f32 %v428, 0.0
        %v437 = vmax.f32 %v429, 0.0
        %v438 = vmax.f32 %v430, 0.0
        %v439 = vmin.f32 %v431, 6.0
        %v440 = vmin.f32 %v432, 6.0
        %v441 = vmin.f32 %v433, 6.0
        %v442 = vmin.f32 %v434, 6.0
        %v443 = vmin.f32 %v435, 6.0
        %v444 = vmin.f32 %v436, 6.0
        %v445 = vmin.f32 %v437, 6.0
        %v446 = vmin.f32 %v438, 6.0
        %v447 = vmul.f32 %v405, %v439
        %v448 = vmul.f32 %v407, %v440
        %v449 = vmul.f32 %v409, %v441
        %v450 = vmul.f32 %v411, %v442
        %v451 = vmul.f32 %v415, %v443
        %v452 = vmul.f32 %v417, %v444
        %v453 = vmul.f32 %v419, %v445
        %v454 = vmul.f32 %v421, %v446
        %v455 = vld [vmem:[%s2] sm:$0xff]
        %v456 = vld [vmem:[%s2 + $0x8] sm:$0xff]
        %v457 = vld [vmem:[%s2 + $0x10] sm:$0xff]
        %v458 = vld [vmem:[%s2 + $0x18] sm:$0xff]
        %v459 = vld [vmem:[%s6] sm:$0xff]
        %v460 = vld [vmem:[%s6 + $0x8] sm:$0xff]
        %462 = vset.pattern.permute.xlu0 4
        %463 = vperm.xlu0 %462, %v455
        %v464 = vpop.permute.xlu0 %463
        %467 = vset.pattern.permute.xlu0 4
        %468 = vperm.xlu0 %467, %v456
        %v469 = vpop.permute.xlu0 %468
        %472 = vset.pattern.permute.xlu0 4
        %473 = vperm.xlu0 %472, %v457
        %v474 = vpop.permute.xlu0 %473
        %477 = vset.pattern.permute.xlu0 4
        %478 = vperm.xlu0 %477, %v458
        %v479 = vpop.permute.xlu0 %478
        %v481 = vmul.f32 %v447, %v464
        %v482 = vmul.f32 %v448, %v464
        %v483 = vmul.f32 %v449, %v469
        %v484 = vmul.f32 %v450, %v469
        %v485 = vmul.f32 %v451, %v474
        %v486 = vmul.f32 %v452, %v474
        %v487 = vmul.f32 %v453, %v479
        %v488 = vmul.f32 %v454, %v479
        %489 = vrot.lane.b32.xlu0 %v447, 17
        %v490 = vpop.permute.xlu0 %489
        %491 = vrot.lane.b32.xlu0 %v449, 17
        %v492 = vpop.permute.xlu0 %491
        %493 = vrot.lane.b32.xlu0 %v451, 17
        %v494 = vpop.permute.xlu0 %493
        %495 = vrot.lane.b32.xlu0 %v453, 17
        %v496 = vpop.permute.xlu0 %495
        %497 = vrot.lane.b32.xlu0 %v448, 17
        %v498 = vpop.permute.xlu0 %497
        %499 = vrot.lane.b32.xlu0 %v450, 17
        %v500 = vpop.permute.xlu0 %499
        %501 = vrot.lane.b32.xlu0 %v452, 17
        %v502 = vpop.permute.xlu0 %501
        %503 = vrot.lane.b32.xlu0 %v454, 17
        %v504 = vpop.permute.xlu0 %503
        %v505 = vlaneseq
        %v506 = vand.u32 %v505, 127
        %vm507 = vcmp.lt.s32.totalorder %v506, 17
        %v508 = vsel %vm507, %v490, %v498
        %v509 = vsel %vm507, %v492, %v500
        %v510 = vsel %vm507, %v494, %v502
        %v511 = vsel %vm507, %v496, %v504
        %v512 = vsel %vm507, %v498, %v490
        %v513 = vsel %vm507, %v500, %v492
        %v514 = vsel %vm507, %v502, %v494
        %v515 = vsel %vm507, %v504, %v496
        %v516 = vlaneseq
        %v517 = vshrl.u32 %v516, 7
        %v518 = vsub.s32 0, %v517
        %v519 = vrot.slane %v459, %v518
        %v520 = vlaneseq
        %v521 = vshrl.u32 %v520, 7
        %v522 = vsub.s32 0, %v521
        %v523 = vrot.slane %v460, %v522
        %v524 = vmul.f32 %v512, %v519
        %v525 = vmul.f32 %v508, %v523
        %v526 = vmul.f32 %v513, %v519
        %v527 = vmul.f32 %v509, %v523
        %v528 = vmul.f32 %v514, %v519
        %v529 = vmul.f32 %v510, %v523
        %v530 = vmul.f32 %v515, %v519
        %v531 = vmul.f32 %v511, %v523
        %532 = vset.pattern.permute.xlu0 0
        %533 = vperm.xlu0 %532, %v455
        %v534 = vpop.permute.xlu0 %533
        %536 = vset.pattern.permute.xlu0 0
        %537 = vperm.xlu0 %536, %v456
        %v538 = vpop.permute.xlu0 %537
        %540 = vset.pattern.permute.xlu0 0
        %541 = vperm.xlu0 %540, %v457
        %v542 = vpop.permute.xlu0 %541
        %544 = vset.pattern.permute.xlu0 0
        %545 = vperm.xlu0 %544, %v458
        %v546 = vpop.permute.xlu0 %545
        %v548 = vmul.f32 %v524, %v534
        %v549 = vmul.f32 %v525, %v534
        %v550 = vmul.f32 %v526, %v538
        %v551 = vmul.f32 %v527, %v538
        %v552 = vmul.f32 %v528, %v542
        %v553 = vmul.f32 %v529, %v542
        %v554 = vmul.f32 %v530, %v546
        %v555 = vmul.f32 %v531, %v546
        %v556 = vadd.f32 %v481, %v548
        %v557 = vadd.f32 %v482, %v549
        %v558 = vadd.f32 %v483, %v550
        %v559 = vadd.f32 %v484, %v551
        %v560 = vadd.f32 %v485, %v552
        %v561 = vadd.f32 %v486, %v553
        %v562 = vadd.f32 %v487, %v554
        %v563 = vadd.f32 %v488, %v555
        %564 = vrot.lane.b32.xlu0 %v447, 16
        %v565 = vpop.permute.xlu0 %564
        %566 = vrot.lane.b32.xlu0 %v449, 16
        %v567 = vpop.permute.xlu0 %566
        %568 = vrot.lane.b32.xlu0 %v451, 16
        %v569 = vpop.permute.xlu0 %568
        %570 = vrot.lane.b32.xlu0 %v453, 16
        %v571 = vpop.permute.xlu0 %570
        %572 = vrot.lane.b32.xlu0 %v448, 16
        %v573 = vpop.permute.xlu0 %572
        %574 = vrot.lane.b32.xlu0 %v450, 16
        %v575 = vpop.permute.xlu0 %574
        %576 = vrot.lane.b32.xlu0 %v452, 16
        %v577 = vpop.permute.xlu0 %576
        %578 = vrot.lane.b32.xlu0 %v454, 16
        %v579 = vpop.permute.xlu0 %578
        %vm580 = vcmp.lt.s32.totalorder %v506, 16
        %v581 = vsel %vm580, %v565, %v573
        %v582 = vsel %vm580, %v567, %v575
        %v583 = vsel %vm580, %v569, %v577
        %v584 = vsel %vm580, %v571, %v579
        %v585 = vsel %vm580, %v573, %v565
        %v586 = vsel %vm580, %v575, %v567
        %v587 = vsel %vm580, %v577, %v569
        %v588 = vsel %vm580, %v579, %v571
        %v589 = vlaneseq
        %v590 = vshrl.u32 %v589, 7
        %v591 = vsub.s32 1, %v590
        %v592 = vrot.slane %v459, %v591
        %v593 = vlaneseq
        %v594 = vshrl.u32 %v593, 7
        %v595 = vsub.s32 1, %v594
        %v596 = vrot.slane %v460, %v595
        %v597 = vmul.f32 %v585, %v592
        %v598 = vmul.f32 %v581, %v596
        %v599 = vmul.f32 %v586, %v592
        %v600 = vmul.f32 %v582, %v596
        %v601 = vmul.f32 %v587, %v592
        %v602 = vmul.f32 %v583, %v596
        %v603 = vmul.f32 %v588, %v592
        %v604 = vmul.f32 %v584, %v596
        %605 = vset.pattern.permute.xlu0 1
        %606 = vperm.xlu0 %605, %v455
        %v607 = vpop.permute.xlu0 %606
        %609 = vset.pattern.permute.xlu0 1
        %610 = vperm.xlu0 %609, %v456
        %v611 = vpop.permute.xlu0 %610
        %613 = vset.pattern.permute.xlu0 1
        %614 = vperm.xlu0 %613, %v457
        %v615 = vpop.permute.xlu0 %614
        %617 = vset.pattern.permute.xlu0 1
        %618 = vperm.xlu0 %617, %v458
        %v619 = vpop.permute.xlu0 %618
        %v621 = vmul.f32 %v597, %v607
        %v622 = vmul.f32 %v598, %v607
        %v623 = vmul.f32 %v599, %v611
        %v624 = vmul.f32 %v600, %v611
        %v625 = vmul.f32 %v601, %v615
        %v626 = vmul.f32 %v602, %v615
        %v627 = vmul.f32 %v603, %v619
        %v628 = vmul.f32 %v604, %v619
        %v629 = vadd.f32 %v556, %v621
        %v630 = vadd.f32 %v557, %v622
        %v631 = vadd.f32 %v558, %v623
        %v632 = vadd.f32 %v559, %v624
        %v633 = vadd.f32 %v560, %v625
        %v634 = vadd.f32 %v561, %v626
        %v635 = vadd.f32 %v562, %v627
        %v636 = vadd.f32 %v563, %v628
        %637 = vrot.lane.b32.xlu0 %v447, 15
        %v638 = vpop.permute.xlu0 %637
        %639 = vrot.lane.b32.xlu0 %v449, 15
        %v640 = vpop.permute.xlu0 %639
        %641 = vrot.lane.b32.xlu0 %v451, 15
        %v642 = vpop.permute.xlu0 %641
        %643 = vrot.lane.b32.xlu0 %v453, 15
        %v644 = vpop.permute.xlu0 %643
        %645 = vrot.lane.b32.xlu0 %v448, 15
        %v646 = vpop.permute.xlu0 %645
        %647 = vrot.lane.b32.xlu0 %v450, 15
        %v648 = vpop.permute.xlu0 %647
        %649 = vrot.lane.b32.xlu0 %v452, 15
        %v650 = vpop.permute.xlu0 %649
        %651 = vrot.lane.b32.xlu0 %v454, 15
        %v652 = vpop.permute.xlu0 %651
        %vm653 = vcmp.lt.s32.totalorder %v506, 15
        %v654 = vsel %vm653, %v638, %v646
        %v655 = vsel %vm653, %v640, %v648
        %v656 = vsel %vm653, %v642, %v650
        %v657 = vsel %vm653, %v644, %v652
        %v658 = vsel %vm653, %v646, %v638
        %v659 = vsel %vm653, %v648, %v640
        %v660 = vsel %vm653, %v650, %v642
        %v661 = vsel %vm653, %v652, %v644
        %v662 = vlaneseq
        %v663 = vshrl.u32 %v662, 7
        %v664 = vsub.s32 2, %v663
        %v665 = vrot.slane %v459, %v664
        %v666 = vlaneseq
        %v667 = vshrl.u32 %v666, 7
        %v668 = vsub.s32 2, %v667
        %v669 = vrot.slane %v460, %v668
        %v670 = vmul.f32 %v658, %v665
        %v671 = vmul.f32 %v654, %v669
        %v672 = vmul.f32 %v659, %v665
        %v673 = vmul.f32 %v655, %v669
        %v674 = vmul.f32 %v660, %v665
        %v675 = vmul.f32 %v656, %v669
        %v676 = vmul.f32 %v661, %v665
        %v677 = vmul.f32 %v657, %v669
        %678 = vset.pattern.permute.xlu0 2
        %679 = vperm.xlu0 %678, %v455
        %v680 = vpop.permute.xlu0 %679
        %682 = vset.pattern.permute.xlu0 2
        %683 = vperm.xlu0 %682, %v456
        %v684 = vpop.permute.xlu0 %683
        %686 = vset.pattern.permute.xlu0 2
        %687 = vperm.xlu0 %686, %v457
        %v688 = vpop.permute.xlu0 %687
        %690 = vset.pattern.permute.xlu0 2
        %691 = vperm.xlu0 %690, %v458
        %v692 = vpop.permute.xlu0 %691
        %v694 = vmul.f32 %v670, %v680
        %v695 = vmul.f32 %v671, %v680
        %v696 = vmul.f32 %v672, %v684
        %v697 = vmul.f32 %v673, %v684
        %v698 = vmul.f32 %v674, %v688
        %v699 = vmul.f32 %v675, %v688
        %v700 = vmul.f32 %v676, %v692
        %v701 = vmul.f32 %v677, %v692
        %v702 = vadd.f32 %v629, %v694
        %v703 = vadd.f32 %v630, %v695
        %v704 = vadd.f32 %v631, %v696
        %v705 = vadd.f32 %v632, %v697
        %v706 = vadd.f32 %v633, %v698
        %v707 = vadd.f32 %v634, %v699
        %v708 = vadd.f32 %v635, %v700
        %v709 = vadd.f32 %v636, %v701
        %710 = vrot.lane.b32.xlu0 %v447, 1
        %v711 = vpop.permute.xlu0 %710
        %712 = vrot.lane.b32.xlu0 %v449, 1
        %v713 = vpop.permute.xlu0 %712
        %714 = vrot.lane.b32.xlu0 %v451, 1
        %v715 = vpop.permute.xlu0 %714
        %716 = vrot.lane.b32.xlu0 %v453, 1
        %v717 = vpop.permute.xlu0 %716
        %718 = vrot.lane.b32.xlu0 %v448, 1
        %v719 = vpop.permute.xlu0 %718
        %720 = vrot.lane.b32.xlu0 %v450, 1
        %v721 = vpop.permute.xlu0 %720
        %722 = vrot.lane.b32.xlu0 %v452, 1
        %v723 = vpop.permute.xlu0 %722
        %724 = vrot.lane.b32.xlu0 %v454, 1
        %v725 = vpop.permute.xlu0 %724
        %vm726 = vcmp.lt.s32.totalorder %v506, 1
        %v727 = vsel %vm726, %v711, %v719
        %v728 = vsel %vm726, %v713, %v721
        %v729 = vsel %vm726, %v715, %v723
        %v730 = vsel %vm726, %v717, %v725
        %v731 = vsel %vm726, %v719, %v711
        %v732 = vsel %vm726, %v721, %v713
        %v733 = vsel %vm726, %v723, %v715
        %v734 = vsel %vm726, %v725, %v717
        %v735 = vlaneseq
        %v736 = vshrl.u32 %v735, 7
        %v737 = vsub.s32 3, %v736
        %v738 = vrot.slane %v459, %v737
        %v739 = vlaneseq
        %v740 = vshrl.u32 %v739, 7
        %v741 = vsub.s32 3, %v740
        %v742 = vrot.slane %v460, %v741
        %v743 = vmul.f32 %v731, %v738
        %v744 = vmul.f32 %v727, %v742
        %v745 = vmul.f32 %v732, %v738
        %v746 = vmul.f32 %v728, %v742
        %v747 = vmul.f32 %v733, %v738
        %v748 = vmul.f32 %v729, %v742
        %v749 = vmul.f32 %v734, %v738
        %v750 = vmul.f32 %v730, %v742
        %751 = vset.pattern.permute.xlu0 3
        %752 = vperm.xlu0 %751, %v455
        %v753 = vpop.permute.xlu0 %752
        %755 = vset.pattern.permute.xlu0 3
        %756 = vperm.xlu0 %755, %v456
        %v757 = vpop.permute.xlu0 %756
        %759 = vset.pattern.permute.xlu0 3
        %760 = vperm.xlu0 %759, %v457
        %v761 = vpop.permute.xlu0 %760
        %763 = vset.pattern.permute.xlu0 3
        %764 = vperm.xlu0 %763, %v458
        %v765 = vpop.permute.xlu0 %764
        %v767 = vmul.f32 %v743, %v753
        %v768 = vmul.f32 %v744, %v753
        %v769 = vmul.f32 %v745, %v757
        %v770 = vmul.f32 %v746, %v757
        %v771 = vmul.f32 %v747, %v761
        %v772 = vmul.f32 %v748, %v761
        %v773 = vmul.f32 %v749, %v765
        %v774 = vmul.f32 %v750, %v765
        %v775 = vadd.f32 %v702, %v767
        %v776 = vadd.f32 %v703, %v768
        %v777 = vadd.f32 %v704, %v769
        %v778 = vadd.f32 %v705, %v770
        %v779 = vadd.f32 %v706, %v771
        %v780 = vadd.f32 %v707, %v772
        %v781 = vadd.f32 %v708, %v773
        %v782 = vadd.f32 %v709, %v774
        %783 = vrot.lane.b32.xlu0 %v447, 127
        %v784 = vpop.permute.xlu0 %783
        %785 = vrot.lane.b32.xlu0 %v449, 127
        %v786 = vpop.permute.xlu0 %785
        %787 = vrot.lane.b32.xlu0 %v451, 127
        %v788 = vpop.permute.xlu0 %787
        %789 = vrot.lane.b32.xlu0 %v453, 127
        %v790 = vpop.permute.xlu0 %789
        %791 = vrot.lane.b32.xlu0 %v448, 127
        %v792 = vpop.permute.xlu0 %791
        %793 = vrot.lane.b32.xlu0 %v450, 127
        %v794 = vpop.permute.xlu0 %793
        %795 = vrot.lane.b32.xlu0 %v452, 127
        %v796 = vpop.permute.xlu0 %795
        %797 = vrot.lane.b32.xlu0 %v454, 127
        %v798 = vpop.permute.xlu0 %797
        %vm799 = vcmp.lt.s32.totalorder %v506, 127
        %v800 = vsel %vm799, %v784, %v792
        %v801 = vsel %vm799, %v786, %v794
        %v802 = vsel %vm799, %v788, %v796
        %v803 = vsel %vm799, %v790, %v798
        %v804 = vsel %vm799, %v792, %v784
        %v805 = vsel %vm799, %v794, %v786
        %v806 = vsel %vm799, %v796, %v788
        %v807 = vsel %vm799, %v798, %v790
        %v808 = vlaneseq
        %v809 = vshrl.u32 %v808, 7
        %v810 = vsub.s32 4, %v809
        %v811 = vrot.slane %v459, %v810
        %v812 = vlaneseq
        %v813 = vshrl.u32 %v812, 7
        %v814 = vsub.s32 4, %v813
        %v815 = vrot.slane %v460, %v814
        %v816 = vmul.f32 %v800, %v811
        %v817 = vmul.f32 %v804, %v815
        %v818 = vmul.f32 %v801, %v811
        %v819 = vmul.f32 %v805, %v815
        %v820 = vmul.f32 %v802, %v811
        %v821 = vmul.f32 %v806, %v815
        %v822 = vmul.f32 %v803, %v811
        %v823 = vmul.f32 %v807, %v815
        %824 = vset.pattern.permute.xlu0 5
        %825 = vperm.xlu0 %824, %v455
        %v826 = vpop.permute.xlu0 %825
        %828 = vset.pattern.permute.xlu0 5
        %829 = vperm.xlu0 %828, %v456
        %v830 = vpop.permute.xlu0 %829
        %832 = vset.pattern.permute.xlu0 5
        %833 = vperm.xlu0 %832, %v457
        %v834 = vpop.permute.xlu0 %833
        %836 = vset.pattern.permute.xlu0 5
        %837 = vperm.xlu0 %836, %v458
        %v838 = vpop.permute.xlu0 %837
        %v840 = vmul.f32 %v816, %v826
        %v841 = vmul.f32 %v817, %v826
        %v842 = vmul.f32 %v818, %v830
        %v843 = vmul.f32 %v819, %v830
        %v844 = vmul.f32 %v820, %v834
        %v845 = vmul.f32 %v821, %v834
        %v846 = vmul.f32 %v822, %v838
        %v847 = vmul.f32 %v823, %v838
        %v848 = vadd.f32 %v775, %v840
        %v849 = vadd.f32 %v776, %v841
        %v850 = vadd.f32 %v777, %v842
        %v851 = vadd.f32 %v778, %v843
        %v852 = vadd.f32 %v779, %v844
        %v853 = vadd.f32 %v780, %v845
        %v854 = vadd.f32 %v781, %v846
        %v855 = vadd.f32 %v782, %v847
        %856 = vrot.lane.b32.xlu0 %v447, 113
        %v857 = vpop.permute.xlu0 %856
        %858 = vrot.lane.b32.xlu0 %v449, 113
        %v859 = vpop.permute.xlu0 %858
        %860 = vrot.lane.b32.xlu0 %v451, 113
        %v861 = vpop.permute.xlu0 %860
        %862 = vrot.lane.b32.xlu0 %v453, 113
        %v863 = vpop.permute.xlu0 %862
        %864 = vrot.lane.b32.xlu0 %v448, 113
        %v865 = vpop.permute.xlu0 %864
        %866 = vrot.lane.b32.xlu0 %v450, 113
        %v867 = vpop.permute.xlu0 %866
        %868 = vrot.lane.b32.xlu0 %v452, 113
        %v869 = vpop.permute.xlu0 %868
        %870 = vrot.lane.b32.xlu0 %v454, 113
        %v871 = vpop.permute.xlu0 %870
        %vm872 = vcmp.lt.s32.totalorder %v506, 113
        %v873 = vsel %vm872, %v857, %v865
        %v874 = vsel %vm872, %v859, %v867
        %v875 = vsel %vm872, %v861, %v869
        %v876 = vsel %vm872, %v863, %v871
        %v877 = vsel %vm872, %v865, %v857
        %v878 = vsel %vm872, %v867, %v859
        %v879 = vsel %vm872, %v869, %v861
        %v880 = vsel %vm872, %v871, %v863
        %v881 = vlaneseq
        %v882 = vshrl.u32 %v881, 7
        %v883 = vsub.s32 5, %v882
        %v884 = vrot.slane %v459, %v883
        %v885 = vlaneseq
        %v886 = vshrl.u32 %v885, 7
        %v887 = vsub.s32 5, %v886
        %v888 = vrot.slane %v460, %v887
        %v889 = vmul.f32 %v873, %v884
        %v890 = vmul.f32 %v877, %v888
        %v891 = vmul.f32 %v874, %v884
        %v892 = vmul.f32 %v878, %v888
        %v893 = vmul.f32 %v875, %v884
        %v894 = vmul.f32 %v879, %v888
        %v895 = vmul.f32 %v876, %v884
        %v896 = vmul.f32 %v880, %v888
        %897 = vset.pattern.permute.xlu0 6
        %898 = vperm.xlu0 %897, %v455
        %v899 = vpop.permute.xlu0 %898
        %901 = vset.pattern.permute.xlu0 6
        %902 = vperm.xlu0 %901, %v456
        %v903 = vpop.permute.xlu0 %902
        %905 = vset.pattern.permute.xlu0 6
        %906 = vperm.xlu0 %905, %v457
        %v907 = vpop.permute.xlu0 %906
        %909 = vset.pattern.permute.xlu0 6
        %910 = vperm.xlu0 %909, %v458
        %v911 = vpop.permute.xlu0 %910
        %v913 = vmul.f32 %v889, %v899
        %v914 = vmul.f32 %v890, %v899
        %v915 = vmul.f32 %v891, %v903
        %v916 = vmul.f32 %v892, %v903
        %v917 = vmul.f32 %v893, %v907
        %v918 = vmul.f32 %v894, %v907
        %v919 = vmul.f32 %v895, %v911
        %v920 = vmul.f32 %v896, %v911
        %v921 = vadd.f32 %v848, %v913
        %v922 = vadd.f32 %v849, %v914
        %v923 = vadd.f32 %v850, %v915
        %v924 = vadd.f32 %v851, %v916
        %v925 = vadd.f32 %v852, %v917
        %v926 = vadd.f32 %v853, %v918
        %v927 = vadd.f32 %v854, %v919
        %v928 = vadd.f32 %v855, %v920
        %929 = vrot.lane.b32.xlu0 %v447, 112
        %v930 = vpop.permute.xlu0 %929
        %931 = vrot.lane.b32.xlu0 %v449, 112
        %v932 = vpop.permute.xlu0 %931
        %933 = vrot.lane.b32.xlu0 %v451, 112
        %v934 = vpop.permute.xlu0 %933
        %935 = vrot.lane.b32.xlu0 %v453, 112
        %v936 = vpop.permute.xlu0 %935
        %937 = vrot.lane.b32.xlu0 %v448, 112
        %v938 = vpop.permute.xlu0 %937
        %939 = vrot.lane.b32.xlu0 %v450, 112
        %v940 = vpop.permute.xlu0 %939
        %941 = vrot.lane.b32.xlu0 %v452, 112
        %v942 = vpop.permute.xlu0 %941
        %943 = vrot.lane.b32.xlu0 %v454, 112
        %v944 = vpop.permute.xlu0 %943
        %vm945 = vcmp.lt.s32.totalorder %v506, 112
        %v946 = vsel %vm945, %v930, %v938
        %v947 = vsel %vm945, %v932, %v940
        %v948 = vsel %vm945, %v934, %v942
        %v949 = vsel %vm945, %v936, %v944
        %v950 = vsel %vm945, %v938, %v930
        %v951 = vsel %vm945, %v940, %v932
        %v952 = vsel %vm945, %v942, %v934
        %v953 = vsel %vm945, %v944, %v936
        %v954 = vlaneseq
        %v955 = vshrl.u32 %v954, 7
        %v956 = vsub.s32 6, %v955
        %v957 = vrot.slane %v459, %v956
        %v958 = vlaneseq
        %v959 = vshrl.u32 %v958, 7
        %v960 = vsub.s32 6, %v959
        %v961 = vrot.slane %v460, %v960
        %v962 = vmul.f32 %v946, %v957
        %v963 = vmul.f32 %v950, %v961
        %v964 = vmul.f32 %v947, %v957
        %v965 = vmul.f32 %v951, %v961
        %v966 = vmul.f32 %v948, %v957
        %v967 = vmul.f32 %v952, %v961
        %v968 = vmul.f32 %v949, %v957
        %v969 = vmul.f32 %v953, %v961
        %970 = vset.pattern.permute.xlu0 7
        %971 = vperm.xlu0 %970, %v455
        %v972 = vpop.permute.xlu0 %971
        %974 = vset.pattern.permute.xlu0 7
        %975 = vperm.xlu0 %974, %v456
        %v976 = vpop.permute.xlu0 %975
        %978 = vset.pattern.permute.xlu0 7
        %979 = vperm.xlu0 %978, %v457
        %v980 = vpop.permute.xlu0 %979
        %982 = vset.pattern.permute.xlu0 7
        %983 = vperm.xlu0 %982, %v458
        %v984 = vpop.permute.xlu0 %983
        %v986 = vmul.f32 %v962, %v972
        %v987 = vmul.f32 %v963, %v972
        %v988 = vmul.f32 %v964, %v976
        %v989 = vmul.f32 %v965, %v976
        %v990 = vmul.f32 %v966, %v980
        %v991 = vmul.f32 %v967, %v980
        %v992 = vmul.f32 %v968, %v984
        %v993 = vmul.f32 %v969, %v984
        %v994 = vadd.f32 %v921, %v986
        %v995 = vadd.f32 %v922, %v987
        %v996 = vadd.f32 %v923, %v988
        %v997 = vadd.f32 %v924, %v989
        %v998 = vadd.f32 %v925, %v990
        %v999 = vadd.f32 %v926, %v991
        %v1000 = vadd.f32 %v927, %v992
        %v1001 = vadd.f32 %v928, %v993
        %1002 = vrot.lane.b32.xlu0 %v447, 111
        %v1003 = vpop.permute.xlu0 %1002
        %1004 = vrot.lane.b32.xlu0 %v449, 111
        %v1005 = vpop.permute.xlu0 %1004
        %1006 = vrot.lane.b32.xlu0 %v451, 111
        %v1007 = vpop.permute.xlu0 %1006
        %1008 = vrot.lane.b32.xlu0 %v453, 111
        %v1009 = vpop.permute.xlu0 %1008
        %1010 = vrot.lane.b32.xlu0 %v448, 111
        %v1011 = vpop.permute.xlu0 %1010
        %1012 = vrot.lane.b32.xlu0 %v450, 111
        %v1013 = vpop.permute.xlu0 %1012
        %1014 = vrot.lane.b32.xlu0 %v452, 111
        %v1015 = vpop.permute.xlu0 %1014
        %1016 = vrot.lane.b32.xlu0 %v454, 111
        %v1017 = vpop.permute.xlu0 %1016
        %vm1018 = vcmp.lt.s32.totalorder %v506, 111
        %v1019 = vsel %vm1018, %v1003, %v1011
        %v1020 = vsel %vm1018, %v1005, %v1013
        %v1021 = vsel %vm1018, %v1007, %v1015
        %v1022 = vsel %vm1018, %v1009, %v1017
        %v1023 = vsel %vm1018, %v1011, %v1003
        %v1024 = vsel %vm1018, %v1013, %v1005
        %v1025 = vsel %vm1018, %v1015, %v1007
        %v1026 = vsel %vm1018, %v1017, %v1009
        %v1027 = vlaneseq
        %v1028 = vshrl.u32 %v1027, 7
        %v1029 = vsub.s32 7, %v1028
        %v1030 = vrot.slane %v459, %v1029
        %v1031 = vlaneseq
        %v1032 = vshrl.u32 %v1031, 7
        %v1033 = vsub.s32 7, %v1032
        %v1034 = vrot.slane %v460, %v1033
        %v1035 = vmul.f32 %v1019, %v1030
        %v1036 = vmul.f32 %v1023, %v1034
        %v1037 = vmul.f32 %v1020, %v1030
        %v1038 = vmul.f32 %v1024, %v1034
        %v1039 = vmul.f32 %v1021, %v1030
        %v1040 = vmul.f32 %v1025, %v1034
        %v1041 = vmul.f32 %v1022, %v1030
        %v1042 = vmul.f32 %v1026, %v1034
        %1043 = vset.pattern.permute.xlu0 8
        %1044 = vperm.xlu0 %1043, %v455
        %v1045 = vpop.permute.xlu0 %1044
        %1047 = vset.pattern.permute.xlu0 8
        %1048 = vperm.xlu0 %1047, %v456
        %v1049 = vpop.permute.xlu0 %1048
        %1051 = vset.pattern.permute.xlu0 8
        %1052 = vperm.xlu0 %1051, %v457
        %v1053 = vpop.permute.xlu0 %1052
        %1055 = vset.pattern.permute.xlu0 8
        %1056 = vperm.xlu0 %1055, %v458
        %v1057 = vpop.permute.xlu0 %1056
        %v1059 = vmul.f32 %v1035, %v1045
        %v1060 = vmul.f32 %v1036, %v1045
        %v1061 = vmul.f32 %v1037, %v1049
        %v1062 = vmul.f32 %v1038, %v1049
        %v1063 = vmul.f32 %v1039, %v1053
        %v1064 = vmul.f32 %v1040, %v1053
        %v1065 = vmul.f32 %v1041, %v1057
        %v1066 = vmul.f32 %v1042, %v1057
        %v1067 = vadd.f32 %v994, %v1059
        %v1068 = vadd.f32 %v995, %v1060
        %v1069 = vadd.f32 %v996, %v1061
        %v1070 = vadd.f32 %v997, %v1062
        %v1071 = vadd.f32 %v998, %v1063
        %v1072 = vadd.f32 %v999, %v1064
        %v1073 = vadd.f32 %v1000, %v1065
        %v1074 = vadd.f32 %v1001, %v1066
        %v1075 = vld [vmem:[%s3] sm:$0xff]
        %v1076 = vld [vmem:[%s3 + $0x8] sm:$0xff]
        %v1077 = vld [vmem:[%s3 + $0x10] sm:$0xff]
        %v1078 = vld [vmem:[%s3 + $0x18] sm:$0xff]
        %1080 = vset.pattern.permute.xlu0 0
        %1081 = vperm.xlu0 %1080, %v1075
        %v1082 = vpop.permute.xlu0 %1081
        %1085 = vset.pattern.permute.xlu0 0
        %1086 = vperm.xlu0 %1085, %v1076
        %v1087 = vpop.permute.xlu0 %1086
        %1090 = vset.pattern.permute.xlu0 0
        %1091 = vperm.xlu0 %1090, %v1077
        %v1092 = vpop.permute.xlu0 %1091
        %1095 = vset.pattern.permute.xlu0 0
        %1096 = vperm.xlu0 %1095, %v1078
        %v1097 = vpop.permute.xlu0 %1096
        %v1099 = vadd.f32 %v1067, %v1082
        %v1100 = vadd.f32 %v1068, %v1082
        %v1101 = vadd.f32 %v1069, %v1087
        %v1102 = vadd.f32 %v1070, %v1087
        %v1103 = vadd.f32 %v1071, %v1092
        %v1104 = vadd.f32 %v1072, %v1092
        %v1105 = vadd.f32 %v1073, %v1097
        %v1106 = vadd.f32 %v1074, %v1097
        %v1107 = vadd.f32 %v1099, 3.0
        %v1108 = vadd.f32 %v1100, 3.0
        %v1109 = vadd.f32 %v1101, 3.0
        %v1110 = vadd.f32 %v1102, 3.0
        %v1111 = vadd.f32 %v1103, 3.0
        %v1112 = vadd.f32 %v1104, 3.0
        %v1113 = vadd.f32 %v1105, 3.0
        %v1114 = vadd.f32 %v1106, 3.0
        %v1115 = vmax.f32 %v1107, 0.0
        %v1116 = vmax.f32 %v1108, 0.0
        %v1117 = vmax.f32 %v1109, 0.0
        %v1118 = vmax.f32 %v1110, 0.0
        %v1119 = vmax.f32 %v1111, 0.0
        %v1120 = vmax.f32 %v1112, 0.0
        %v1121 = vmax.f32 %v1113, 0.0
        %v1122 = vmax.f32 %v1114, 0.0
        %v1123 = vmin.f32 %v1115, 6.0
        %v1124 = vmin.f32 %v1116, 6.0
        %v1125 = vmin.f32 %v1117, 6.0
        %v1126 = vmin.f32 %v1118, 6.0
        %v1127 = vmin.f32 %v1119, 6.0
        %v1128 = vmin.f32 %v1120, 6.0
        %v1129 = vmin.f32 %v1121, 6.0
        %v1130 = vmin.f32 %v1122, 6.0
        %v1131 = vmul.f32 %v1099, %v1123
        %v1132 = vmul.f32 %v1100, %v1124
        %v1133 = vmul.f32 %v1101, %v1125
        %v1134 = vmul.f32 %v1102, %v1126
        %v1135 = vmul.f32 %v1103, %v1127
        %v1136 = vmul.f32 %v1104, %v1128
        %v1137 = vmul.f32 %v1105, %v1129
        %v1138 = vmul.f32 %v1106, %v1130
        %v1139 = vld [vmem:[%s4] sm:$0xf]
        %v1140 = vld [vmem:[%s4 + $0x4] sm:$0xf]
        %v1141 = vpack.c.bf16 %v1133, %v1131
        %v1142 = vpack.c.bf16 %v1134, %v1132
        %v1143 = vpack.c.bf16 %v1137, %v1135
        %v1144 = vpack.c.bf16 %v1138, %v1136
        %v1145 = vld [vmem:[%s5] sm:$0xff]
        %v1146 = vld [vmem:[%s5 + $0x8] sm:$0xff]
        %1148 = vset.pattern.permute.xlu0 0
        %1149 = vperm.xlu0 %1148, %v1145
        %v1150 = vpop.permute.xlu0 %1149
        %1153 = vset.pattern.permute.xlu0 0
        %1154 = vperm.xlu0 %1153, %v1146
        %v1155 = vpop.permute.xlu0 %1154
        %v1159 = vunpack.c.l.b16 %v1139
        %v1160 = vunpack.c.l.b16 %v1140
        %v1161 = vpack.c.b16 %v1160, %v1159
        %vm1162 = vcmask 261120
        %v1164 = vsel %vm1162, %v1161, 0
        %1166 = vmatprep.subr.bf16.mxu0 0
        %1167 = vmatpush1.bf16.msra.mxu0 0
        %1168 = vmatprep.subr.bf16.mxu0 0
        %1169 = vmatpush1.bf16.msra.mxu0 0
        %1170 = vmatprep.subr.bf16.mxu0 0
        %1171 = vmatpush1.bf16.msra.mxu0 0
        %1172 = vmatprep.subr.bf16.mxu0 0
        %1173 = vmatpush1.bf16.msra.mxu0 0
        %1174 = vmatprep.subr.bf16.mxu0 0
        %1175 = vmatpush1.bf16.msra.mxu0 0
        %1176 = vmatprep.subr.bf16.mxu0 0
        %1177 = vmatpush1.bf16.msra.mxu0 0
        %1178 = vmatprep.subr.bf16.mxu0 %v1144
        %1179 = vmatpush1.bf16.msra.mxu0 %v1143
        %1180 = vmatprep.subr.bf16.mxu0 %v1142
        %1181 = vmatpush1.bf16.msra.mxu0 %v1141
        %1182 = vmatprep.subr.bf16.mxu0 0
        %1183 = vmatpush2.bf16.msra.mxu0 0
        %1184 = vmatprep.subr.bf16.mxu0 0
        %1185 = vmatpush2.bf16.msra.mxu0 0
        %1186 = vmatprep.subr.bf16.mxu0 0
        %1187 = vmatpush2.bf16.msra.mxu0 0
        %1188 = vmatprep.subr.bf16.mxu0 0
        %1189 = vmatpush2.bf16.msra.mxu0 0
        %1190 = vmatprep.subr.bf16.mxu0 0
        %1191 = vmatpush2.bf16.msra.mxu0 0
        %1192 = vmatprep.subr.bf16.mxu0 0
        %1193 = vmatpush2.bf16.msra.mxu0 0
        %1194 = vmatprep.subr.bf16.mxu0 0
        %1195 = vmatpush2.bf16.msra.mxu0 0
        %1196 = vmatprep.subr.bf16.mxu0 0
        %1197 = vmatpush2.bf16.msra.mxu0 0
        %1198 = vmatprep.mubr.bf16.mxu0 0
        %1199 = vmatmul.mubr.bf16.gmra.mxu0 %v1164
        %v1200 = vpop.f32.mrf.mxu0
        %v1201 = vadd.f32 %v1150, %v1200
        %v1202 = vpop.f32.mrf.mxu0
        %v1203 = vadd.f32 %v1150, %v1202
        %v1204 = vpop.f32.mrf.mxu0
        %v1205 = vadd.f32 %v1155, %v1204
        %v1206 = vpop.f32.mrf.mxu0
        %v1207 = vadd.f32 %v1155, %v1206
        %1208 = vdwg.mxu0
        %1209 = vst [vmem:[%s320] sm:$0xff] %v1201
        %1210 = vst [vmem:[%s320 + $0x8] sm:$0xff] %v1203
        %1211 = vst [vmem:[%s320 + $0x10] sm:$0xff] %v1205
        %1212 = vst [vmem:[%s320 + $0x18] sm:$0xff] %v1207
        %s1213 = sand.u32 %s181, 1
        %s1214 = scalar_lea.sflag [#allocation4], %s1213
        %s1215 = sand.u32 %s181, 1
        %s1216 = smul.addr %s1215, 32
        %s1217 = scalar_lea.vmem [#allocation3], %s1216
        // Predicated region
        $region87: #{tpu_custom_call.1} parent=81 // pred_check
          %p1218 = pneg %p191
        $region88: #{tpu_custom_call.1} parent=81 // pred_check_branch
          %1220 = sbr.rel (%p1218) target = $region90
        $region89: #{tpu_custom_call.1} parent=81 // pred_region
          %s1221 = smul.u32 2, %s21
          %s1223 = ssub.s32 512, 512
          %1224 = vsyncadd %s1214, %s1223
          %s1225 = smul.addr %s1221, 128
          %s1226 = scalar_lea.hbm %s7, %s1225
          %s1227 = sshll.u32 %s1217, 4
          %s1228 = int_to_ptr.vmem [resolvable:$true] %s1227
          %1233 = dma.vmem_to_hbm [thread:$0]  %s1228, 512, %s1226, %s1214, 256, 512, 16
        $region90: #{tpu_custom_call.1} parent=81 // pred_fallthru
          _
      $region82: #{tpu_custom_call.1} parent=5 // pred_fallthru
        _
      %p1234 = scmp.le.s32.totalorder 2, %s16
      // Predicated region
      $region91: #{tpu_custom_call.1} parent=5 // pred_check
        %p1235 = pneg %p1234
      $region92: #{tpu_custom_call.1} parent=5 // pred_check_branch
        %1237 = sbr.rel (%p1235) target = $region94
      $region93: #{tpu_custom_call.1} parent=5 // pred_region
        %s1238 = ssub.s32 %s16, 2
        // Predicated region
        $region95: #{tpu_custom_call.1} parent=93 // pred_check
          %p1239 = pneg %p197
        $region96: #{tpu_custom_call.1} parent=93 // pred_check_branch
          %1241 = sbr.rel (%p1239) target = $region98
        $region97: #{tpu_custom_call.1} parent=93 // pred_region
          %s1242 = sand.u32 %s182, 1
          %s1243 = scalar_lea.sflag [#allocation4], %s1242
          %s1244 = sand.u32 %s182, 1
          %s1245 = smul.addr %s1244, 32
          %s1246 = scalar_lea.vmem [#allocation3], %s1245
          %1247 = dma.done %s1243, 512
        $region98: #{tpu_custom_call.1} parent=93 // pred_fallthru
          _
      $region94: #{tpu_custom_call.1} parent=5 // pred_fallthru
        _
    $region6: #{tpu_custom_call.1} parent=1 // loop_footer
      %s20 = sadd.s32 1, %s16
    $region7: #{tpu_custom_call.1} parent=1 // loop_footer_branch
      %15 = sbr.rel target = $region3
    $region8: #{tpu_custom_call.1} parent=1 // loop_exit
      _
    %1248 = vsyncpa [#allocation4], 1
    %s1249 = scalar_lea.sflag [#allocation4], 1
    %1250 = vsyncpa %s1249, 1

</llo_original>
